<compile_context>
chip_gen: v5e
topology: v5e:2x2
jax: 0.10.0
libtpu: 0.0.40
codegen_flags: <defaults>
</compile_context>

<pallas_src>
import jax
import jax.numpy as jnp
from jax.experimental import pallas as pl
from jax.experimental.pallas import tpu as pltpu


def _cdiv(a, b):
    return -(-a // b)


def _round_up(a, m):
    return _cdiv(a, m) * m


_MIN_MEGACORE_ROWS = 128  # don't split tiny batches (would duplicate weight DMA)


def _fusion_kernel(x1_ref, x2_ref, w1a_ref, w1b_ref, b1_ref, w2_ref, b2_ref, o_ref):
    # x1, x2 : (TM, K) bf16     w1a, w1b : (K, 256) bf16   b1 : (1, 256) f32
    # w2     : (256, C_pad) bf16  b2     : (1, C_pad) f32  o  : (TM, C_pad) f32
    h = jnp.dot(x1_ref[...], w1a_ref[...], preferred_element_type=jnp.float32)
    h = h + jnp.dot(x2_ref[...], w1b_ref[...], preferred_element_type=jnp.float32)
    # Epilogue in f32 (v5e VPU has no bf16 path); Dropout is identity at inference.
    h = jnp.maximum(h + b1_ref[...], 0.0)
    y = jnp.dot(h.astype(w2_ref.dtype), w2_ref[...], preferred_element_type=jnp.float32)
    o_ref[...] = (y + b2_ref[...]).astype(o_ref.dtype)


def prepare_params(w1, b1, w2, b2, A, B, *, compute_dtype=jnp.bfloat16):
    """One-time weight prep (hoisted out of the hot forward path).

    * Permutes w1's rows so the fused-concat kernel can consume the two
      un-concatenated streams directly (cat([x, x_c], 2).view(N, -1) ordering).
    * Pads num_class up to a lane-dense multiple of 128 (unmasked vst).
    * Casts matmul operands to bf16; biases stay f32 for the f32 epilogue.

    Call once per (A, B) input layout and reuse the returned dict.
    """
    K = A * B
    F1 = w1.shape[1]
    num_class = w2.shape[1]
    assert w1.shape[0] == 2 * K, "w1 rows must equal the flattened concat width"

    w1r = w1.reshape(A, 2, B, F1)
    w1a = w1r[:, 0].reshape(K, F1).astype(compute_dtype)   # rows matching `input`
    w1b = w1r[:, 1].reshape(K, F1).astype(compute_dtype)   # rows matching `input_c`

    c_pad = max(128, _round_up(num_class, 128))
    w2p = jnp.zeros((F1, c_pad), compute_dtype).at[:, :num_class].set(
        w2.astype(compute_dtype))
    b2p = jnp.zeros((1, c_pad), jnp.float32).at[:, :num_class].set(
        b2.reshape(1, -1).astype(jnp.float32))
    b1p = b1.reshape(1, F1).astype(jnp.float32)

    return {
        "w1a": w1a, "w1b": w1b, "b1": b1p, "w2": w2p, "b2": b2p,
        "A": A, "B": B, "K": K, "F1": F1,
        "num_class": num_class, "c_pad": c_pad,
        "compute_dtype": compute_dtype,
    }


def late_fusion_forward(inp, inp_c, params, *, block_m=512):
    """inp, inp_c: (N, A, B) each.  Equivalent to
    Linear2(ReLU(Linear1(cat([inp, inp_c], 2).view(N, -1))))."""
    N, A, B = inp.shape
    assert inp_c.shape == (N, A, B), "both streams must share the shape"
    assert (A, B) == (params["A"], params["B"]), "params prepared for another layout"

    K, F1 = params["K"], params["F1"]
    c_pad, num_class = params["c_pad"], params["num_class"]
    cdt = params["compute_dtype"]

    x1 = inp.reshape(N, K).astype(cdt)
    x2 = inp_c.reshape(N, K).astype(cdt)

    # Balanced row tiling: pad to a sublane multiple of 8 and split into
    # near-equal tiles (N=300 -> 2x152, not 512).  For medium/large batches
    # force >= 2 tiles so the "parallel" axis spreads over both v7x cores.
    n8 = _round_up(N, 8)
    num_tiles = _cdiv(n8, block_m)
    if n8 >= 2 * _MIN_MEGACORE_ROWS:
        num_tiles = max(num_tiles, 2)
    tm = _round_up(_cdiv(n8, num_tiles), 8)
    num_tiles = _cdiv(n8, tm)
    n_pad = num_tiles * tm
    if n_pad != N:
        x1 = jnp.pad(x1, ((0, n_pad - N), (0, 0)))
        x2 = jnp.pad(x2, ((0, n_pad - N), (0, 0)))

    act_bytes = jnp.dtype(cdt).itemsize
    cost = pl.CostEstimate(
        flops=2 * n_pad * (2 * K * F1 + F1 * c_pad),
        transcendentals=0,
        bytes_accessed=(2 * n_pad * K * act_bytes        # activation tiles in
                        + 2 * K * F1 * act_bytes         # w1a + w1b
                        + F1 * c_pad * act_bytes         # w2
                        + (F1 + c_pad) * 4               # biases
                        + n_pad * c_pad * 4),            # output
    )

    resident = pl.Buffered(1)  # fetched once (constant index_map) -> no double buffer

    out = pl.pallas_call(
        _fusion_kernel,
        out_shape=jax.ShapeDtypeStruct((n_pad, c_pad), jnp.float32),
        grid_spec=pltpu.PrefetchScalarGridSpec(
            num_scalar_prefetch=0,
            grid=(num_tiles,),
            in_specs=[
                pl.BlockSpec((tm, K), lambda i: (i, 0)),                        # x1 tile
                pl.BlockSpec((tm, K), lambda i: (i, 0)),                        # x2 tile
                pl.BlockSpec((K, F1), lambda i: (0, 0), pipeline_mode=resident),     # w1a
                pl.BlockSpec((K, F1), lambda i: (0, 0), pipeline_mode=resident),     # w1b
                pl.BlockSpec((1, F1), lambda i: (0, 0), pipeline_mode=resident),     # b1
                pl.BlockSpec((F1, c_pad), lambda i: (0, 0), pipeline_mode=resident), # w2
                pl.BlockSpec((1, c_pad), lambda i: (0, 0), pipeline_mode=resident),  # b2
            ],
            out_specs=pl.BlockSpec((tm, c_pad), lambda i: (i, 0)),
        ),
        compiler_params=pltpu.CompilerParams(
            dimension_semantics=("parallel",),      # megacore split on v7x
            vmem_limit_bytes=32 << 20,              # actual footprint ~6-8 MiB
        ),
        cost_estimate=cost,
    )(x1, x2, params["w1a"], params["w1b"], params["b1"], params["w2"], params["b2"])

    return out[:N, :num_class]


def init_params(key, num_class):
    """Deterministic init (shapes match nn.Linear(2048,256), nn.Linear(256,num_class)),
    stored pre-transposed as (in_features, out_features)."""
    k1, k2, k3, k4 = jax.random.split(key, 4)
    lim1 = 1.0 / jnp.sqrt(2048.0)
    lim2 = 1.0 / jnp.sqrt(256.0)
    w1 = jax.random.uniform(k1, (2048, 256), jnp.float32, -lim1, lim1)
    b1 = jax.random.uniform(k2, (1, 256), jnp.float32, -lim1, lim1)
    w2 = jax.random.uniform(k3, (256, num_class), jnp.float32, -lim2, lim2)
    b2 = jax.random.uniform(k4, (1, num_class), jnp.float32, -lim2, lim2)
    return w1, b1, w2, b2


def _reference(inp, inp_c, w1, b1, w2, b2):
    N = inp.shape[0]
    x = jnp.concatenate([inp, inp_c], axis=2).reshape(N, -1)
    return jnp.maximum(x @ w1 + b1, 0.0) @ w2 + b2


if __name__ == "__main__":
    key = jax.random.PRNGKey(0)
    kx, kc, kp = jax.random.split(key, 3)

    num_class = 10
    w1, b1, w2, b2 = init_params(kp, num_class)

    # One-time weight prep per input layout (hoisted out of the hot path).
    params_1x1024 = prepare_params(w1, b1, w2, b2, A=1, B=1024)
    params_2x512 = prepare_params(w1, b1, w2, b2, A=2, B=512)

    # bf16 operands with f32 accumulation -> ~1e-2-level deviation vs f32 ref.
    TOL = dict(atol=3e-2, rtol=3e-2)

    # Case 1: small batch, A=1 (the canonical late-fusion layout).
    N = 2
    inp = jax.random.normal(kx, (N, 1, 1024), jnp.float32)
    inp_c = jax.random.normal(kc, (N, 1, 1024), jnp.float32)
    out = jax.block_until_ready(late_fusion_forward(inp, inp_c, params_1x1024))
    ref = _reference(inp, inp_c, w1, b1, w2, b2)
    assert out.shape == (N, num_class)
    assert jnp.allclose(out, ref, **TOL), "mismatch vs reference (case 1)"

    # Case 2: A > 1 (checks the fused-concat weight permutation) and a
    # non-multiple-of-8 batch (checks row padding).
    N2 = 5
    kx2, kc2 = jax.random.split(jax.random.PRNGKey(1))
    inp2 = jax.random.normal(kx2, (N2, 2, 512), jnp.float32)
    inp2_c = jax.random.normal(kc2, (N2, 2, 512), jnp.float32)
    out2 = jax.block_until_ready(late_fusion_forward(inp2, inp2_c, params_2x512))
    ref2 = _reference(inp2, inp2_c, w1, b1, w2, b2)
    assert out2.shape == (N2, num_class)
    assert jnp.allclose(out2, ref2, **TOL), "mismatch vs reference (case 2)"

    # Case 3: batch big enough to exercise the balanced multi-tile grid
    # (300 -> 2 tiles of 152 rows) and megacore-friendly parallel axis.
    N3 = 300
    kx3, kc3 = jax.random.split(jax.random.PRNGKey(2))
    inp3 = jax.random.normal(kx3, (N3, 1, 1024), jnp.float32)
    inp3_c = jax.random.normal(kc3, (N3, 1, 1024), jnp.float32)
    out3 = jax.block_until_ready(late_fusion_forward(inp3, inp3_c, params_1x1024))
    ref3 = _reference(inp3, inp3_c, w1, b1, w2, b2)
    assert out3.shape == (N3, num_class)
    assert jnp.allclose(out3, ref3, **TOL), "mismatch vs reference (case 3)"

    print("KERNEL_OK")
</pallas_src>

<mosaic_0001>
module attributes {stable_mosaic.version = 11 : i64} {
  func.func @_fusion_kernel(%arg0: i32, %arg1: memref<8x1024xbf16, #tpu.memory_space<vmem>>, %arg2: memref<8x1024xbf16, #tpu.memory_space<vmem>>, %arg3: memref<1024x256xbf16, #tpu.memory_space<vmem>>, %arg4: memref<1024x256xbf16, #tpu.memory_space<vmem>>, %arg5: memref<1x256xf32, #tpu.memory_space<vmem>>, %arg6: memref<256x128xbf16, #tpu.memory_space<vmem>>, %arg7: memref<1x128xf32, #tpu.memory_space<vmem>>, %arg8: memref<8x128xf32, #tpu.memory_space<vmem>>) attributes {dimension_semantics = [#tpu.dimension_semantics<parallel>], iteration_bounds = array<i64: 1>, scalar_prefetch = 0 : i64, scratch_operands = 0 : i64, tpu.core_type = #tpu.core_type<tc>, window_params = [{transform_indices = @transform_0, window_bounds = array<i64: 8, 1024>}, {transform_indices = @transform_1, window_bounds = array<i64: 8, 1024>}, {pipeline_mode = #tpu.pipeline_mode<synchronous>, transform_indices = @transform_2, window_bounds = array<i64: 1024, 256>}, {pipeline_mode = #tpu.pipeline_mode<synchronous>, transform_indices = @transform_3, window_bounds = array<i64: 1024, 256>}, {pipeline_mode = #tpu.pipeline_mode<synchronous>, transform_indices = @transform_4, window_bounds = array<i64: 1, 256>}, {pipeline_mode = #tpu.pipeline_mode<synchronous>, transform_indices = @transform_5, window_bounds = array<i64: 256, 128>}, {pipeline_mode = #tpu.pipeline_mode<synchronous>, transform_indices = @transform_6, window_bounds = array<i64: 1, 128>}, {transform_indices = @transform_7, window_bounds = array<i64: 8, 128>}]} {
    %c0 = arith.constant 0 : index
    %c0_0 = arith.constant 0 : index
    %0 = vector.load %arg1[%c0, %c0_0] : memref<8x1024xbf16, #tpu.memory_space<vmem>>, vector<8x1024xbf16>
    %c0_1 = arith.constant 0 : index
    %c0_2 = arith.constant 0 : index
    %1 = vector.load %arg3[%c0_1, %c0_2] : memref<1024x256xbf16, #tpu.memory_space<vmem>>, vector<1024x256xbf16>
    %cst = arith.constant dense<0.000000e+00> : vector<8x256xf32>
    %2 = tpu.matmul %0, %1, %cst {dimension_numbers = #tpu.dot_dimension_numbers<[1], [0], [0], [1], [0, 0, 1, 1], [], []>} : vector<8x1024xbf16>, vector<1024x256xbf16>, vector<8x256xf32> -> vector<8x256xf32>
    %c0_3 = arith.constant 0 : index
    %c0_4 = arith.constant 0 : index
    %3 = vector.load %arg2[%c0_3, %c0_4] : memref<8x1024xbf16, #tpu.memory_space<vmem>>, vector<8x1024xbf16>
    %c0_5 = arith.constant 0 : index
    %c0_6 = arith.constant 0 : index
    %4 = vector.load %arg4[%c0_5, %c0_6] : memref<1024x256xbf16, #tpu.memory_space<vmem>>, vector<1024x256xbf16>
    %cst_7 = arith.constant dense<0.000000e+00> : vector<8x256xf32>
    %5 = tpu.matmul %3, %4, %cst_7 {dimension_numbers = #tpu.dot_dimension_numbers<[1], [0], [0], [1], [0, 0, 1, 1], [], []>} : vector<8x1024xbf16>, vector<1024x256xbf16>, vector<8x256xf32> -> vector<8x256xf32>
    %6 = arith.addf %2, %5 : vector<8x256xf32>
    %c0_8 = arith.constant 0 : index
    %c0_9 = arith.constant 0 : index
    %7 = vector.load %arg5[%c0_8, %c0_9] : memref<1x256xf32, #tpu.memory_space<vmem>>, vector<1x256xf32>
    %8 = vector.broadcast %7 : vector<1x256xf32> to vector<8x256xf32>
    %9 = arith.addf %6, %8 : vector<8x256xf32>
    %cst_10 = arith.constant 0.000000e+00 : f32
    %10 = vector.broadcast %cst_10 : f32 to vector<8x256xf32>
    %11 = arith.maximumf %9, %10 : vector<8x256xf32>
    %12 = arith.truncf %11 : vector<8x256xf32> to vector<8x256xbf16>
    %c0_11 = arith.constant 0 : index
    %c0_12 = arith.constant 0 : index
    %13 = vector.load %arg6[%c0_11, %c0_12] : memref<256x128xbf16, #tpu.memory_space<vmem>>, vector<256x128xbf16>
    %cst_13 = arith.constant dense<0.000000e+00> : vector<8x128xf32>
    %14 = tpu.matmul %12, %13, %cst_13 {dimension_numbers = #tpu.dot_dimension_numbers<[1], [0], [0], [1], [0, 0, 1, 1], [], []>} : vector<8x256xbf16>, vector<256x128xbf16>, vector<8x128xf32> -> vector<8x128xf32>
    %c0_14 = arith.constant 0 : index
    %c0_15 = arith.constant 0 : index
    %15 = vector.load %arg7[%c0_14, %c0_15] : memref<1x128xf32, #tpu.memory_space<vmem>>, vector<1x128xf32>
    %16 = vector.broadcast %15 : vector<1x128xf32> to vector<8x128xf32>
    %17 = arith.addf %14, %16 : vector<8x128xf32>
    %c0_16 = arith.constant 0 : index
    %c0_17 = arith.constant 0 : index
    %18 = vector.load %arg8[%c0_16, %c0_17] : memref<8x128xf32, #tpu.memory_space<vmem>>, vector<8x128xf32>
    tpu.vector_store %arg8[%c0_16, %c0_17], %17 {strides = array<i32>} : memref<8x128xf32, #tpu.memory_space<vmem>>, vector<8x128xf32>,
    return
  }
  func.func @transform_0(%arg0: i32) -> (i32, i32) {
    %c0_i32 = arith.constant 0 : i32
    %c0_i32_0 = arith.constant 0 : i32
    return %arg0, %c0_i32 : i32, i32
  }
  func.func @transform_1(%arg0: i32) -> (i32, i32) {
    %c0_i32 = arith.constant 0 : i32
    %c0_i32_0 = arith.constant 0 : i32
    return %arg0, %c0_i32 : i32, i32
  }
  func.func @transform_2(%arg0: i32) -> (i32, i32) {
    %c0_i32 = arith.constant 0 : i32
    %c0_i32_0 = arith.constant 0 : i32
    %c0_i32_1 = arith.constant 0 : i32
    return %c0_i32, %c0_i32_0 : i32, i32
  }
  func.func @transform_3(%arg0: i32) -> (i32, i32) {
    %c0_i32 = arith.constant 0 : i32
    %c0_i32_0 = arith.constant 0 : i32
    %c0_i32_1 = arith.constant 0 : i32
    return %c0_i32, %c0_i32_0 : i32, i32
  }
  func.func @transform_4(%arg0: i32) -> (i32, i32) {
    %c0_i32 = arith.constant 0 : i32
    %c0_i32_0 = arith.constant 0 : i32
    %c0_i32_1 = arith.constant 0 : i32
    return %c0_i32, %c0_i32_0 : i32, i32
  }
  func.func @transform_5(%arg0: i32) -> (i32, i32) {
    %c0_i32 = arith.constant 0 : i32
    %c0_i32_0 = arith.constant 0 : i32
    %c0_i32_1 = arith.constant 0 : i32
    return %c0_i32, %c0_i32_0 : i32, i32
  }
  func.func @transform_6(%arg0: i32) -> (i32, i32) {
    %c0_i32 = arith.constant 0 : i32
    %c0_i32_0 = arith.constant 0 : i32
    %c0_i32_1 = arith.constant 0 : i32
    return %c0_i32, %c0_i32_0 : i32, i32
  }
  func.func @transform_7(%arg0: i32) -> (i32, i32) {
    %c0_i32 = arith.constant 0 : i32
    %c0_i32_0 = arith.constant 0 : i32
    return %arg0, %c0_i32 : i32, i32
  }
}

</mosaic_0001>

<llo_original>
// kernel: tpu_custom_call.1
$region0: #{tpu_custom_call.1}
  #allocation0 [shape = 'u32[]', space=smem, size = 0x4, offset = 0x4, fixed_abs, tag = 'smem constant byte address 0x4 - core index']
  #allocation1 [shape = 'u32[72,128]{1,0:T(1,128)}', space=vmem, size = 0x9000, scoped, tag = 'internal scratch']
  %s0 = inlined_call_operand.hbm [shape: bf16[8,1024], index: 0, kind: input, shape index: {}]
  %s1 = inlined_call_operand.hbm [shape: bf16[8,1024], index: 1, kind: input, shape index: {}]
  %s2 = inlined_call_operand.hbm [shape: bf16[1024,256], index: 2, kind: input, shape index: {}]
  %s3 = inlined_call_operand.hbm [shape: bf16[1024,256], index: 3, kind: input, shape index: {}]
  %s4 = inlined_call_operand.vmem [shape: f32[1,256], index: 4, kind: input, shape index: {}]
  %s5 = inlined_call_operand.hbm [shape: bf16[256,128], index: 5, kind: input, shape index: {}]
  %s6 = inlined_call_operand.vmem [shape: f32[1,128], index: 6, kind: input, shape index: {}]
  %s7 = inlined_call_operand.hbm [shape: f32[8,128], index: 7, kind: output, shape index: {}]
  %s8 = sld [smem:[#allocation0]]
  $region58: #{tpu_custom_call.1} parent=0
    _
  %s10 = ssub.s32 1, %s8
  %s11 = scalar_select 0, %s10, %s8
  $region1: #{tpu_custom_call.1} parent=0
    #allocation2 [shape = 'u8[16384]{0}', space=vmem, size = 0x4000, scoped, tag = 'input window, operand 0, single buffered']
    #allocation3 [shape = 's32[1]{0}', space=sflag, size = 0x4, scoped, tag = 'scoped memory for tpu_custom_call.1']
    #allocation4 [shape = 's32[1]{0}', space=sflag, size = 0x4, scoped, tag = 'scoped memory for tpu_custom_call.1']
    #allocation5 [shape = 'u8[16384]{0}', space=vmem, size = 0x4000, scoped, tag = 'input window, operand 1, single buffered']
    #allocation6 [shape = 's32[1]{0}', space=sflag, size = 0x4, scoped, tag = 'scoped memory for tpu_custom_call.1']
    #allocation7 [shape = 'u8[524288]{0}', space=vmem, size = 0x80000, scoped, tag = 'input window, operand 2, single buffered']
    #allocation8 [shape = 'u8[524288]{0}', space=vmem, size = 0x80000, scoped, tag = 'input window, operand 3, single buffered']
    #allocation9 [shape = 's32[1]{0}', space=sflag, size = 0x4, scoped, tag = 'scoped memory for tpu_custom_call.1']
    #allocation10 [shape = 'u8[65536]{0}', space=vmem, size = 0x10000, scoped, tag = 'input window, operand 5, single buffered']
    #allocation11 [shape = 'u8[4096]{0}', space=vmem, size = 0x1000, scoped, tag = 'output window, operand 0, single buffered']
    %12 = vsyncpa [#allocation3], 0
    %13 = vsyncpa [#allocation6], 0
    %14 = vsyncpa [#allocation9], 0
    %15 = vsyncpa [#allocation4], 0
    // Predicated region
    $region2: #{tpu_custom_call.1} parent=1 // pred_check
      _
    $region3: #{tpu_custom_call.1} parent=1 // pred_check_branch
      %17 = sbr.rel (0) target = $region5
    $region4: #{tpu_custom_call.1} parent=1 // pred_region
      %19 = vsyncadd [#allocation3], 0
      %s21 = sshll.u32 %s0, 4
      %s22 = int_to_ptr.hbm [resolvable:$true] %s21
      %s23 = sshll.u32 [#allocation2], 4
      %s24 = int_to_ptr.vmem [resolvable:$true] %s23
      %26 = dma.hbm_to_vmem [thread:$0]  %s22, 512, %s24, [#allocation3]
    $region5: #{tpu_custom_call.1} parent=1 // pred_fallthru
      _
    // Predicated region
    $region6: #{tpu_custom_call.1} parent=1 // pred_check
      _
    $region7: #{tpu_custom_call.1} parent=1 // pred_check_branch
      %28 = sbr.rel (0) target = $region9
    $region8: #{tpu_custom_call.1} parent=1 // pred_region
      %30 = vsyncadd [#allocation6], 0
      %s32 = sshll.u32 %s1, 4
      %s33 = int_to_ptr.hbm [resolvable:$true] %s32
      %s34 = sshll.u32 [#allocation5], 4
      %s35 = int_to_ptr.vmem [resolvable:$true] %s34
      %37 = dma.hbm_to_vmem [thread:$0]  %s33, 512, %s35, [#allocation6]
    $region9: #{tpu_custom_call.1} parent=1 // pred_fallthru
      _
    // Predicated region
    $region10: #{tpu_custom_call.1} parent=1 // pred_check
      _
    $region11: #{tpu_custom_call.1} parent=1 // pred_check_branch
      %39 = sbr.rel (0) target = $region13
    $region12: #{tpu_custom_call.1} parent=1 // pred_region
      %41 = vsyncadd [#allocation6], 0
      %s42 = sshll.u32 %s2, 4
      %s43 = int_to_ptr.hbm [resolvable:$true] %s42
      %s44 = sshll.u32 [#allocation7], 4
      %s45 = int_to_ptr.vmem [resolvable:$true] %s44
      %50 = dma.hbm_to_vmem [thread:$0]  %s43, 16384, %s45, [#allocation6], 128, 128, 8
    $region13: #{tpu_custom_call.1} parent=1 // pred_fallthru
      _
    // Predicated region
    $region14: #{tpu_custom_call.1} parent=1 // pred_check
      _
    $region15: #{tpu_custom_call.1} parent=1 // pred_check_branch
      %52 = sbr.rel (0) target = $region17
    $region16: #{tpu_custom_call.1} parent=1 // pred_region
      %54 = vsyncadd [#allocation9], 0
      %s55 = sshll.u32 %s3, 4
      %s56 = int_to_ptr.hbm [resolvable:$true] %s55
      %s57 = sshll.u32 [#allocation8], 4
      %s58 = int_to_ptr.vmem [resolvable:$true] %s57
      %63 = dma.hbm_to_vmem [thread:$0]  %s56, 16384, %s58, [#allocation9], 128, 128, 8
    $region17: #{tpu_custom_call.1} parent=1 // pred_fallthru
      _
    // Predicated region
    $region18: #{tpu_custom_call.1} parent=1 // pred_check
      _
    $region19: #{tpu_custom_call.1} parent=1 // pred_check_branch
      %65 = sbr.rel (0) target = $region21
    $region20: #{tpu_custom_call.1} parent=1 // pred_region
      _
    $region21: #{tpu_custom_call.1} parent=1 // pred_fallthru
      _
    // Predicated region
    $region22: #{tpu_custom_call.1} parent=1 // pred_check
      _
    $region23: #{tpu_custom_call.1} parent=1 // pred_check_branch
      %67 = sbr.rel (0) target = $region25
    $region24: #{tpu_custom_call.1} parent=1 // pred_region
      %69 = vsyncadd [#allocation9], 0
      %s70 = sshll.u32 %s5, 4
      %s71 = int_to_ptr.hbm [resolvable:$true] %s70
      %s72 = sshll.u32 [#allocation10], 4
      %s73 = int_to_ptr.vmem [resolvable:$true] %s72
      %78 = dma.hbm_to_vmem [thread:$0]  %s71, 2048, %s73, [#allocation9], 64, 64, 4
    $region25: #{tpu_custom_call.1} parent=1 // pred_fallthru
      _
    // Predicated region
    $region26: #{tpu_custom_call.1} parent=1 // pred_check
      _
    $region27: #{tpu_custom_call.1} parent=1 // pred_check_branch
      %80 = sbr.rel (0) target = $region29
    $region28: #{tpu_custom_call.1} parent=1 // pred_region
      _
    $region29: #{tpu_custom_call.1} parent=1 // pred_fallthru
      _
    // Predicated region
    $region30: #{tpu_custom_call.1} parent=1 // pred_check
      _
    $region31: #{tpu_custom_call.1} parent=1 // pred_check_branch
      %82 = sbr.rel (0) target = $region33
    $region32: #{tpu_custom_call.1} parent=1 // pred_region
      %84 = dma.done [#allocation3], 512
    $region33: #{tpu_custom_call.1} parent=1 // pred_fallthru
      _
    // Predicated region
    $region34: #{tpu_custom_call.1} parent=1 // pred_check
      _
    $region35: #{tpu_custom_call.1} parent=1 // pred_check_branch
      %86 = sbr.rel (0) target = $region37
    $region36: #{tpu_custom_call.1} parent=1 // pred_region
      %88 = dma.done [#allocation6], 512
    $region37: #{tpu_custom_call.1} parent=1 // pred_fallthru
      _
    // Predicated region
    $region38: #{tpu_custom_call.1} parent=1 // pred_check
      _
    $region39: #{tpu_custom_call.1} parent=1 // pred_check_branch
      %90 = sbr.rel (0) target = $region41
    $region40: #{tpu_custom_call.1} parent=1 // pred_region
      %92 = dma.done [#allocation6], 16384
    $region41: #{tpu_custom_call.1} parent=1 // pred_fallthru
      _
    // Predicated region
    $region42: #{tpu_custom_call.1} parent=1 // pred_check
      _
    $region43: #{tpu_custom_call.1} parent=1 // pred_check_branch
      %94 = sbr.rel (0) target = $region45
    $region44: #{tpu_custom_call.1} parent=1 // pred_region
      %96 = dma.done [#allocation9], 16384
    $region45: #{tpu_custom_call.1} parent=1 // pred_fallthru
      _
    // Predicated region
    $region46: #{tpu_custom_call.1} parent=1 // pred_check
      _
    $region47: #{tpu_custom_call.1} parent=1 // pred_check_branch
      %98 = sbr.rel (0) target = $region49
    $region48: #{tpu_custom_call.1} parent=1 // pred_region
      %100 = dma.done [#allocation9], 2048
    $region49: #{tpu_custom_call.1} parent=1 // pred_fallthru
      _
    %v101 = vld [vmem:[#allocation2] sm:$0xff]
    %v102 = vld [vmem:[#allocation2 + $0x8] sm:$0xff]
    %v103 = vld [vmem:[#allocation2 + $0x10] sm:$0xff]
    %v104 = vld [vmem:[#allocation2 + $0x18] sm:$0xff]
    %v105 = vld [vmem:[#allocation7] sm:$0xff]
    %v106 = vld [vmem:[#allocation7 + $0x8] sm:$0xff]
    %v107 = vld [vmem:[#allocation7 + $0x10] sm:$0xff]
    %v108 = vld [vmem:[#allocation7 + $0x18] sm:$0xff]
    %v109 = vld [vmem:[#allocation7 + $0x20] sm:$0xff]
    %v110 = vld [vmem:[#allocation7 + $0x28] sm:$0xff]
    %v111 = vld [vmem:[#allocation7 + $0x30] sm:$0xff]
    %v112 = vld [vmem:[#allocation7 + $0x38] sm:$0xff]
    %v113 = vld [vmem:[#allocation7 + $0x40] sm:$0xff]
    %v114 = vld [vmem:[#allocation7 + $0x48] sm:$0xff]
    %v115 = vld [vmem:[#allocation7 + $0x50] sm:$0xff]
    %v116 = vld [vmem:[#allocation7 + $0x58] sm:$0xff]
    %v117 = vld [vmem:[#allocation7 + $0x60] sm:$0xff]
    %v118 = vld [vmem:[#allocation7 + $0x68] sm:$0xff]
    %v119 = vld [vmem:[#allocation7 + $0x70] sm:$0xff]
    %v120 = vld [vmem:[#allocation7 + $0x78] sm:$0xff]
    %v121 = vld [vmem:[#allocation7 + $0x80] sm:$0xff]
    %v122 = vld [vmem:[#allocation7 + $0x88] sm:$0xff]
    %v123 = vld [vmem:[#allocation7 + $0x90] sm:$0xff]
    %v124 = vld [vmem:[#allocation7 + $0x98] sm:$0xff]
    %v125 = vld [vmem:[#allocation7 + $0xa0] sm:$0xff]
    %v126 = vld [vmem:[#allocation7 + $0xa8] sm:$0xff]
    %v127 = vld [vmem:[#allocation7 + $0xb0] sm:$0xff]
    %v128 = vld [vmem:[#allocation7 + $0xb8] sm:$0xff]
    %v129 = vld [vmem:[#allocation7 + $0xc0] sm:$0xff]
    %v130 = vld [vmem:[#allocation7 + $0xc8] sm:$0xff]
    %v131 = vld [vmem:[#allocation7 + $0xd0] sm:$0xff]
    %v132 = vld [vmem:[#allocation7 + $0xd8] sm:$0xff]
    %v133 = vld [vmem:[#allocation7 + $0xe0] sm:$0xff]
    %v134 = vld [vmem:[#allocation7 + $0xe8] sm:$0xff]
    %v135 = vld [vmem:[#allocation7 + $0xf0] sm:$0xff]
    %v136 = vld [vmem:[#allocation7 + $0xf8] sm:$0xff]
    %v137 = vld [vmem:[#allocation7 + $0x100] sm:$0xff]
    %v138 = vld [vmem:[#allocation7 + $0x108] sm:$0xff]
    %v139 = vld [vmem:[#allocation7 + $0x110] sm:$0xff]
    %v140 = vld [vmem:[#allocation7 + $0x118] sm:$0xff]
    %v141 = vld [vmem:[#allocation7 + $0x120] sm:$0xff]
    %v142 = vld [vmem:[#allocation7 + $0x128] sm:$0xff]
    %v143 = vld [vmem:[#allocation7 + $0x130] sm:$0xff]
    %v144 = vld [vmem:[#allocation7 + $0x138] sm:$0xff]
    %v145 = vld [vmem:[#allocation7 + $0x140] sm:$0xff]
    %v146 = vld [vmem:[#allocation7 + $0x148] sm:$0xff]
    %v147 = vld [vmem:[#allocation7 + $0x150] sm:$0xff]
    %v148 = vld [vmem:[#allocation7 + $0x158] sm:$0xff]
    %v149 = vld [vmem:[#allocation7 + $0x160] sm:$0xff]
    %v150 = vld [vmem:[#allocation7 + $0x168] sm:$0xff]
    %v151 = vld [vmem:[#allocation7 + $0x170] sm:$0xff]
    %v152 = vld [vmem:[#allocation7 + $0x178] sm:$0xff]
    %v153 = vld [vmem:[#allocation7 + $0x180] sm:$0xff]
    %v154 = vld [vmem:[#allocation7 + $0x188] sm:$0xff]
    %v155 = vld [vmem:[#allocation7 + $0x190] sm:$0xff]
    %v156 = vld [vmem:[#allocation7 + $0x198] sm:$0xff]
    %v157 = vld [vmem:[#allocation7 + $0x1a0] sm:$0xff]
    %v158 = vld [vmem:[#allocation7 + $0x1a8] sm:$0xff]
    %v159 = vld [vmem:[#allocation7 + $0x1b0] sm:$0xff]
    %v160 = vld [vmem:[#allocation7 + $0x1b8] sm:$0xff]
    %v161 = vld [vmem:[#allocation7 + $0x1c0] sm:$0xff]
    %v162 = vld [vmem:[#allocation7 + $0x1c8] sm:$0xff]
    %v163 = vld [vmem:[#allocation7 + $0x1d0] sm:$0xff]
    %v164 = vld [vmem:[#allocation7 + $0x1d8] sm:$0xff]
    %v165 = vld [vmem:[#allocation7 + $0x1e0] sm:$0xff]
    %v166 = vld [vmem:[#allocation7 + $0x1e8] sm:$0xff]
    %v167 = vld [vmem:[#allocation7 + $0x1f0] sm:$0xff]
    %v168 = vld [vmem:[#allocation7 + $0x1f8] sm:$0xff]
    %v169 = vld [vmem:[#allocation7 + $0x200] sm:$0xff]
    %v170 = vld [vmem:[#allocation7 + $0x208] sm:$0xff]
    %v171 = vld [vmem:[#allocation7 + $0x210] sm:$0xff]
    %v172 = vld [vmem:[#allocation7 + $0x218] sm:$0xff]
    %v173 = vld [vmem:[#allocation7 + $0x220] sm:$0xff]
    %v174 = vld [vmem:[#allocation7 + $0x228] sm:$0xff]
    %v175 = vld [vmem:[#allocation7 + $0x230] sm:$0xff]
    %v176 = vld [vmem:[#allocation7 + $0x238] sm:$0xff]
    %v177 = vld [vmem:[#allocation7 + $0x240] sm:$0xff]
    %v178 = vld [vmem:[#allocation7 + $0x248] sm:$0xff]
    %v179 = vld [vmem:[#allocation7 + $0x250] sm:$0xff]
    %v180 = vld [vmem:[#allocation7 + $0x258] sm:$0xff]
    %v181 = vld [vmem:[#allocation7 + $0x260] sm:$0xff]
    %v182 = vld [vmem:[#allocation7 + $0x268] sm:$0xff]
    %v183 = vld [vmem:[#allocation7 + $0x270] sm:$0xff]
    %v184 = vld [vmem:[#allocation7 + $0x278] sm:$0xff]
    %v185 = vld [vmem:[#allocation7 + $0x280] sm:$0xff]
    %v186 = vld [vmem:[#allocation7 + $0x288] sm:$0xff]
    %v187 = vld [vmem:[#allocation7 + $0x290] sm:$0xff]
    %v188 = vld [vmem:[#allocation7 + $0x298] sm:$0xff]
    %v189 = vld [vmem:[#allocation7 + $0x2a0] sm:$0xff]
    %v190 = vld [vmem:[#allocation7 + $0x2a8] sm:$0xff]
    %v191 = vld [vmem:[#allocation7 + $0x2b0] sm:$0xff]
    %v192 = vld [vmem:[#allocation7 + $0x2b8] sm:$0xff]
    %v193 = vld [vmem:[#allocation7 + $0x2c0] sm:$0xff]
    %v194 = vld [vmem:[#allocation7 + $0x2c8] sm:$0xff]
    %v195 = vld [vmem:[#allocation7 + $0x2d0] sm:$0xff]
    %v196 = vld [vmem:[#allocation7 + $0x2d8] sm:$0xff]
    %v197 = vld [vmem:[#allocation7 + $0x2e0] sm:$0xff]
    %v198 = vld [vmem:[#allocation7 + $0x2e8] sm:$0xff]
    %v199 = vld [vmem:[#allocation7 + $0x2f0] sm:$0xff]
    %v200 = vld [vmem:[#allocation7 + $0x2f8] sm:$0xff]
    %v201 = vld [vmem:[#allocation7 + $0x300] sm:$0xff]
    %v202 = vld [vmem:[#allocation7 + $0x308] sm:$0xff]
    %v203 = vld [vmem:[#allocation7 + $0x310] sm:$0xff]
    %v204 = vld [vmem:[#allocation7 + $0x318] sm:$0xff]
    %v205 = vld [vmem:[#allocation7 + $0x320] sm:$0xff]
    %v206 = vld [vmem:[#allocation7 + $0x328] sm:$0xff]
    %v207 = vld [vmem:[#allocation7 + $0x330] sm:$0xff]
    %v208 = vld [vmem:[#allocation7 + $0x338] sm:$0xff]
    %v209 = vld [vmem:[#allocation7 + $0x340] sm:$0xff]
    %v210 = vld [vmem:[#allocation7 + $0x348] sm:$0xff]
    %v211 = vld [vmem:[#allocation7 + $0x350] sm:$0xff]
    %v212 = vld [vmem:[#allocation7 + $0x358] sm:$0xff]
    %v213 = vld [vmem:[#allocation7 + $0x360] sm:$0xff]
    %v214 = vld [vmem:[#allocation7 + $0x368] sm:$0xff]
    %v215 = vld [vmem:[#allocation7 + $0x370] sm:$0xff]
    %v216 = vld [vmem:[#allocation7 + $0x378] sm:$0xff]
    %v217 = vld [vmem:[#allocation7 + $0x380] sm:$0xff]
    %v218 = vld [vmem:[#allocation7 + $0x388] sm:$0xff]
    %v219 = vld [vmem:[#allocation7 + $0x390] sm:$0xff]
    %v220 = vld [vmem:[#allocation7 + $0x398] sm:$0xff]
    %v221 = vld [vmem:[#allocation7 + $0x3a0] sm:$0xff]
    %v222 = vld [vmem:[#allocation7 + $0x3a8] sm:$0xff]
    %v223 = vld [vmem:[#allocation7 + $0x3b0] sm:$0xff]
    %v224 = vld [vmem:[#allocation7 + $0x3b8] sm:$0xff]
    %v225 = vld [vmem:[#allocation7 + $0x3c0] sm:$0xff]
    %v226 = vld [vmem:[#allocation7 + $0x3c8] sm:$0xff]
    %v227 = vld [vmem:[#allocation7 + $0x3d0] sm:$0xff]
    %v228 = vld [vmem:[#allocation7 + $0x3d8] sm:$0xff]
    %v229 = vld [vmem:[#allocation7 + $0x3e0] sm:$0xff]
    %v230 = vld [vmem:[#allocation7 + $0x3e8] sm:$0xff]
    %v231 = vld [vmem:[#allocation7 + $0x3f0] sm:$0xff]
    %v232 = vld [vmem:[#allocation7 + $0x3f8] sm:$0xff]
    %v233 = vld [vmem:[#allocation5] sm:$0xff]
    %v234 = vld [vmem:[#allocation5 + $0x8] sm:$0xff]
    %v235 = vld [vmem:[#allocation5 + $0x10] sm:$0xff]
    %v236 = vld [vmem:[#allocation5 + $0x18] sm:$0xff]
    %v237 = vld [vmem:[#allocation8] sm:$0xff]
    %v238 = vld [vmem:[#allocation8 + $0x8] sm:$0xff]
    %v239 = vld [vmem:[#allocation8 + $0x10] sm:$0xff]
    %v240 = vld [vmem:[#allocation8 + $0x18] sm:$0xff]
    %v241 = vld [vmem:[#allocation8 + $0x20] sm:$0xff]
    %v242 = vld [vmem:[#allocation8 + $0x28] sm:$0xff]
    %v243 = vld [vmem:[#allocation8 + $0x30] sm:$0xff]
    %v244 = vld [vmem:[#allocation8 + $0x38] sm:$0xff]
    %v245 = vld [vmem:[#allocation8 + $0x40] sm:$0xff]
    %v246 = vld [vmem:[#allocation8 + $0x48] sm:$0xff]
    %v247 = vld [vmem:[#allocation8 + $0x50] sm:$0xff]
    %v248 = vld [vmem:[#allocation8 + $0x58] sm:$0xff]
    %v249 = vld [vmem:[#allocation8 + $0x60] sm:$0xff]
    %v250 = vld [vmem:[#allocation8 + $0x68] sm:$0xff]
    %v251 = vld [vmem:[#allocation8 + $0x70] sm:$0xff]
    %v252 = vld [vmem:[#allocation8 + $0x78] sm:$0xff]
    %v253 = vld [vmem:[#allocation8 + $0x80] sm:$0xff]
    %v254 = vld [vmem:[#allocation8 + $0x88] sm:$0xff]
    %v255 = vld [vmem:[#allocation8 + $0x90] sm:$0xff]
    %v256 = vld [vmem:[#allocation8 + $0x98] sm:$0xff]
    %v257 = vld [vmem:[#allocation8 + $0xa0] sm:$0xff]
    %v258 = vld [vmem:[#allocation8 + $0xa8] sm:$0xff]
    %v259 = vld [vmem:[#allocation8 + $0xb0] sm:$0xff]
    %v260 = vld [vmem:[#allocation8 + $0xb8] sm:$0xff]
    %v261 = vld [vmem:[#allocation8 + $0xc0] sm:$0xff]
    %v262 = vld [vmem:[#allocation8 + $0xc8] sm:$0xff]
    %v263 = vld [vmem:[#allocation8 + $0xd0] sm:$0xff]
    %v264 = vld [vmem:[#allocation8 + $0xd8] sm:$0xff]
    %v265 = vld [vmem:[#allocation8 + $0xe0] sm:$0xff]
    %v266 = vld [vmem:[#allocation8 + $0xe8] sm:$0xff]
    %v267 = vld [vmem:[#allocation8 + $0xf0] sm:$0xff]
    %v268 = vld [vmem:[#allocation8 + $0xf8] sm:$0xff]
    %v269 = vld [vmem:[#allocation8 + $0x100] sm:$0xff]
    %v270 = vld [vmem:[#allocation8 + $0x108] sm:$0xff]
    %v271 = vld [vmem:[#allocation8 + $0x110] sm:$0xff]
    %v272 = vld [vmem:[#allocation8 + $0x118] sm:$0xff]
    %v273 = vld [vmem:[#allocation8 + $0x120] sm:$0xff]
    %v274 = vld [vmem:[#allocation8 + $0x128] sm:$0xff]
    %v275 = vld [vmem:[#allocation8 + $0x130] sm:$0xff]
    %v276 = vld [vmem:[#allocation8 + $0x138] sm:$0xff]
    %v277 = vld [vmem:[#allocation8 + $0x140] sm:$0xff]
    %v278 = vld [vmem:[#allocation8 + $0x148] sm:$0xff]
    %v279 = vld [vmem:[#allocation8 + $0x150] sm:$0xff]
    %v280 = vld [vmem:[#allocation8 + $0x158] sm:$0xff]
    %v281 = vld [vmem:[#allocation8 + $0x160] sm:$0xff]
    %v282 = vld [vmem:[#allocation8 + $0x168] sm:$0xff]
    %v283 = vld [vmem:[#allocation8 + $0x170] sm:$0xff]
    %v284 = vld [vmem:[#allocation8 + $0x178] sm:$0xff]
    %v285 = vld [vmem:[#allocation8 + $0x180] sm:$0xff]
    %v286 = vld [vmem:[#allocation8 + $0x188] sm:$0xff]
    %v287 = vld [vmem:[#allocation8 + $0x190] sm:$0xff]
    %v288 = vld [vmem:[#allocation8 + $0x198] sm:$0xff]
    %v289 = vld [vmem:[#allocation8 + $0x1a0] sm:$0xff]
    %v290 = vld [vmem:[#allocation8 + $0x1a8] sm:$0xff]
    %v291 = vld [vmem:[#allocation8 + $0x1b0] sm:$0xff]
    %v292 = vld [vmem:[#allocation8 + $0x1b8] sm:$0xff]
    %v293 = vld [vmem:[#allocation8 + $0x1c0] sm:$0xff]
    %v294 = vld [vmem:[#allocation8 + $0x1c8] sm:$0xff]
    %v295 = vld [vmem:[#allocation8 + $0x1d0] sm:$0xff]
    %v296 = vld [vmem:[#allocation8 + $0x1d8] sm:$0xff]
    %v297 = vld [vmem:[#allocation8 + $0x1e0] sm:$0xff]
    %v298 = vld [vmem:[#allocation8 + $0x1e8] sm:$0xff]
    %v299 = vld [vmem:[#allocation8 + $0x1f0] sm:$0xff]
    %v300 = vld [vmem:[#allocation8 + $0x1f8] sm:$0xff]
    %v301 = vld [vmem:[#allocation8 + $0x200] sm:$0xff]
    %v302 = vld [vmem:[#allocation8 + $0x208] sm:$0xff]
    %v303 = vld [vmem:[#allocation8 + $0x210] sm:$0xff]
    %v304 = vld [vmem:[#allocation8 + $0x218] sm:$0xff]
    %v305 = vld [vmem:[#allocation8 + $0x220] sm:$0xff]
    %v306 = vld [vmem:[#allocation8 + $0x228] sm:$0xff]
    %v307 = vld [vmem:[#allocation8 + $0x230] sm:$0xff]
    %v308 = vld [vmem:[#allocation8 + $0x238] sm:$0xff]
    %v309 = vld [vmem:[#allocation8 + $0x240] sm:$0xff]
    %v310 = vld [vmem:[#allocation8 + $0x248] sm:$0xff]
    %v311 = vld [vmem:[#allocation8 + $0x250] sm:$0xff]
    %v312 = vld [vmem:[#allocation8 + $0x258] sm:$0xff]
    %v313 = vld [vmem:[#allocation8 + $0x260] sm:$0xff]
    %v314 = vld [vmem:[#allocation8 + $0x268] sm:$0xff]
    %v315 = vld [vmem:[#allocation8 + $0x270] sm:$0xff]
    %v316 = vld [vmem:[#allocation8 + $0x278] sm:$0xff]
    %v317 = vld [vmem:[#allocation8 + $0x280] sm:$0xff]
    %v318 = vld [vmem:[#allocation8 + $0x288] sm:$0xff]
    %v319 = vld [vmem:[#allocation8 + $0x290] sm:$0xff]
    %v320 = vld [vmem:[#allocation8 + $0x298] sm:$0xff]
    %v321 = vld [vmem:[#allocation8 + $0x2a0] sm:$0xff]
    %v322 = vld [vmem:[#allocation8 + $0x2a8] sm:$0xff]
    %v323 = vld [vmem:[#allocation8 + $0x2b0] sm:$0xff]
    %v324 = vld [vmem:[#allocation8 + $0x2b8] sm:$0xff]
    %v325 = vld [vmem:[#allocation8 + $0x2c0] sm:$0xff]
    %v326 = vld [vmem:[#allocation8 + $0x2c8] sm:$0xff]
    %v327 = vld [vmem:[#allocation8 + $0x2d0] sm:$0xff]
    %v328 = vld [vmem:[#allocation8 + $0x2d8] sm:$0xff]
    %v329 = vld [vmem:[#allocation8 + $0x2e0] sm:$0xff]
    %v330 = vld [vmem:[#allocation8 + $0x2e8] sm:$0xff]
    %v331 = vld [vmem:[#allocation8 + $0x2f0] sm:$0xff]
    %v332 = vld [vmem:[#allocation8 + $0x2f8] sm:$0xff]
    %v333 = vld [vmem:[#allocation8 + $0x300] sm:$0xff]
    %v334 = vld [vmem:[#allocation8 + $0x308] sm:$0xff]
    %v335 = vld [vmem:[#allocation8 + $0x310] sm:$0xff]
    %v336 = vld [vmem:[#allocation8 + $0x318] sm:$0xff]
    %v337 = vld [vmem:[#allocation8 + $0x320] sm:$0xff]
    %v338 = vld [vmem:[#allocation8 + $0x328] sm:$0xff]
    %v339 = vld [vmem:[#allocation8 + $0x330] sm:$0xff]
    %v340 = vld [vmem:[#allocation8 + $0x338] sm:$0xff]
    %v341 = vld [vmem:[#allocation8 + $0x340] sm:$0xff]
    %v342 = vld [vmem:[#allocation8 + $0x348] sm:$0xff]
    %v343 = vld [vmem:[#allocation8 + $0x350] sm:$0xff]
    %v344 = vld [vmem:[#allocation8 + $0x358] sm:$0xff]
    %v345 = vld [vmem:[#allocation8 + $0x360] sm:$0xff]
    %v346 = vld [vmem:[#allocation8 + $0x368] sm:$0xff]
    %v347 = vld [vmem:[#allocation8 + $0x370] sm:$0xff]
    %v348 = vld [vmem:[#allocation8 + $0x378] sm:$0xff]
    %v349 = vld [vmem:[#allocation8 + $0x380] sm:$0xff]
    %v350 = vld [vmem:[#allocation8 + $0x388] sm:$0xff]
    %v351 = vld [vmem:[#allocation8 + $0x390] sm:$0xff]
    %v352 = vld [vmem:[#allocation8 + $0x398] sm:$0xff]
    %v353 = vld [vmem:[#allocation8 + $0x3a0] sm:$0xff]
    %v354 = vld [vmem:[#allocation8 + $0x3a8] sm:$0xff]
    %v355 = vld [vmem:[#allocation8 + $0x3b0] sm:$0xff]
    %v356 = vld [vmem:[#allocation8 + $0x3b8] sm:$0xff]
    %v357 = vld [vmem:[#allocation8 + $0x3c0] sm:$0xff]
    %v358 = vld [vmem:[#allocation8 + $0x3c8] sm:$0xff]
    %v359 = vld [vmem:[#allocation8 + $0x3d0] sm:$0xff]
    %v360 = vld [vmem:[#allocation8 + $0x3d8] sm:$0xff]
    %v361 = vld [vmem:[#allocation8 + $0x3e0] sm:$0xff]
    %v362 = vld [vmem:[#allocation8 + $0x3e8] sm:$0xff]
    %v363 = vld [vmem:[#allocation8 + $0x3f0] sm:$0xff]
    %v364 = vld [vmem:[#allocation8 + $0x3f8] sm:$0xff]
    %v369 = vunpack.c.l.b16 %v233
    %v370 = vunpack.c.h.b16 %v233
    %v371 = vunpack.c.l.b16 %v234
    %v372 = vunpack.c.h.b16 %v234
    %v373 = vunpack.c.l.b16 %v235
    %v374 = vunpack.c.h.b16 %v235
    %v375 = vunpack.c.l.b16 %v236
    %v376 = vunpack.c.h.b16 %v236
    %v377 = vpack.c.b16 %v369, %v369
    %v378 = vpack.c.b16 %v370, %v370
    %v379 = vpack.c.b16 %v371, %v371
    %v380 = vpack.c.b16 %v372, %v372
    %v381 = vpack.c.b16 %v373, %v373
    %v382 = vpack.c.b16 %v374, %v374
    %v383 = vpack.c.b16 %v375, %v375
    %v384 = vpack.c.b16 %v376, %v376
    %v521 = vunpack.c.l.b16 %v237
    %v522 = vunpack.c.h.b16 %v237
    %v523 = vunpack.c.l.b16 %v238
    %v524 = vunpack.c.h.b16 %v238
    %v525 = vunpack.c.l.b16 %v239
    %v526 = vunpack.c.h.b16 %v239
    %v527 = vunpack.c.l.b16 %v240
    %v528 = vunpack.c.h.b16 %v240
    %v529 = vunpack.c.l.b16 %v241
    %v530 = vunpack.c.h.b16 %v241
    %v531 = vunpack.c.l.b16 %v242
    %v532 = vunpack.c.h.b16 %v242
    %v533 = vunpack.c.l.b16 %v243
    %v534 = vunpack.c.h.b16 %v243
    %v535 = vunpack.c.l.b16 %v244
    %v536 = vunpack.c.h.b16 %v244
    %v537 = vunpack.c.l.b16 %v245
    %v538 = vunpack.c.h.b16 %v245
    %v539 = vunpack.c.l.b16 %v246
    %v540 = vunpack.c.h.b16 %v246
    %v541 = vunpack.c.l.b16 %v247
    %v542 = vunpack.c.h.b16 %v247
    %v543 = vunpack.c.l.b16 %v248
    %v544 = vunpack.c.h.b16 %v248
    %v545 = vunpack.c.l.b16 %v249
    %v546 = vunpack.c.h.b16 %v249
    %v547 = vunpack.c.l.b16 %v250
    %v548 = vunpack.c.h.b16 %v250
    %v549 = vunpack.c.l.b16 %v251
    %v550 = vunpack.c.h.b16 %v251
    %v551 = vunpack.c.l.b16 %v252
    %v552 = vunpack.c.h.b16 %v252
    %v553 = vunpack.c.l.b16 %v253
    %v554 = vunpack.c.h.b16 %v253
    %v555 = vunpack.c.l.b16 %v254
    %v556 = vunpack.c.h.b16 %v254
    %v557 = vunpack.c.l.b16 %v255
    %v558 = vunpack.c.h.b16 %v255
    %v559 = vunpack.c.l.b16 %v256
    %v560 = vunpack.c.h.b16 %v256
    %v561 = vunpack.c.l.b16 %v257
    %v562 = vunpack.c.h.b16 %v257
    %v563 = vunpack.c.l.b16 %v258
    %v564 = vunpack.c.h.b16 %v258
    %v565 = vunpack.c.l.b16 %v259
    %v566 = vunpack.c.h.b16 %v259
    %v567 = vunpack.c.l.b16 %v260
    %v568 = vunpack.c.h.b16 %v260
    %v569 = vunpack.c.l.b16 %v261
    %v570 = vunpack.c.h.b16 %v261
    %v571 = vunpack.c.l.b16 %v262
    %v572 = vunpack.c.h.b16 %v262
    %v573 = vunpack.c.l.b16 %v263
    %v574 = vunpack.c.h.b16 %v263
    %v575 = vunpack.c.l.b16 %v264
    %v576 = vunpack.c.h.b16 %v264
    %v577 = vunpack.c.l.b16 %v265
    %v578 = vunpack.c.h.b16 %v265
    %v579 = vunpack.c.l.b16 %v266
    %v580 = vunpack.c.h.b16 %v266
    %v581 = vunpack.c.l.b16 %v267
    %v582 = vunpack.c.h.b16 %v267
    %v583 = vunpack.c.l.b16 %v268
    %v584 = vunpack.c.h.b16 %v268
    %v585 = vunpack.c.l.b16 %v269
    %v586 = vunpack.c.h.b16 %v269
    %v587 = vunpack.c.l.b16 %v270
    %v588 = vunpack.c.h.b16 %v270
    %v589 = vunpack.c.l.b16 %v271
    %v590 = vunpack.c.h.b16 %v271
    %v591 = vunpack.c.l.b16 %v272
    %v592 = vunpack.c.h.b16 %v272
    %v593 = vunpack.c.l.b16 %v273
    %v594 = vunpack.c.h.b16 %v273
    %v595 = vunpack.c.l.b16 %v274
    %v596 = vunpack.c.h.b16 %v274
    %v597 = vunpack.c.l.b16 %v275
    %v598 = vunpack.c.h.b16 %v275
    %v599 = vunpack.c.l.b16 %v276
    %v600 = vunpack.c.h.b16 %v276
    %v601 = vunpack.c.l.b16 %v277
    %v602 = vunpack.c.h.b16 %v277
    %v603 = vunpack.c.l.b16 %v278
    %v604 = vunpack.c.h.b16 %v278
    %v605 = vunpack.c.l.b16 %v279
    %v606 = vunpack.c.h.b16 %v279
    %v607 = vunpack.c.l.b16 %v280
    %v608 = vunpack.c.h.b16 %v280
    %v609 = vunpack.c.l.b16 %v281
    %v610 = vunpack.c.h.b16 %v281
    %v611 = vunpack.c.l.b16 %v282
    %v612 = vunpack.c.h.b16 %v282
    %v613 = vunpack.c.l.b16 %v283
    %v614 = vunpack.c.h.b16 %v283
    %v615 = vunpack.c.l.b16 %v284
    %v616 = vunpack.c.h.b16 %v284
    %v617 = vunpack.c.l.b16 %v285
    %v618 = vunpack.c.h.b16 %v285
    %v619 = vunpack.c.l.b16 %v286
    %v620 = vunpack.c.h.b16 %v286
    %v621 = vunpack.c.l.b16 %v287
    %v622 = vunpack.c.h.b16 %v287
    %v623 = vunpack.c.l.b16 %v288
    %v624 = vunpack.c.h.b16 %v288
    %v625 = vunpack.c.l.b16 %v289
    %v626 = vunpack.c.h.b16 %v289
    %v627 = vunpack.c.l.b16 %v290
    %v628 = vunpack.c.h.b16 %v290
    %v629 = vunpack.c.l.b16 %v291
    %v630 = vunpack.c.h.b16 %v291
    %v631 = vunpack.c.l.b16 %v292
    %v632 = vunpack.c.h.b16 %v292
    %v633 = vunpack.c.l.b16 %v293
    %v634 = vunpack.c.h.b16 %v293
    %v635 = vunpack.c.l.b16 %v294
    %v636 = vunpack.c.h.b16 %v294
    %v637 = vunpack.c.l.b16 %v295
    %v638 = vunpack.c.h.b16 %v295
    %v639 = vunpack.c.l.b16 %v296
    %v640 = vunpack.c.h.b16 %v296
    %v641 = vunpack.c.l.b16 %v297
    %v642 = vunpack.c.h.b16 %v297
    %v643 = vunpack.c.l.b16 %v298
    %v644 = vunpack.c.h.b16 %v298
    %v645 = vunpack.c.l.b16 %v299
    %v646 = vunpack.c.h.b16 %v299
    %v647 = vunpack.c.l.b16 %v300
    %v648 = vunpack.c.h.b16 %v300
    %v649 = vunpack.c.l.b16 %v301
    %v650 = vunpack.c.h.b16 %v301
    %v651 = vunpack.c.l.b16 %v302
    %v652 = vunpack.c.h.b16 %v302
    %v653 = vunpack.c.l.b16 %v303
    %v654 = vunpack.c.h.b16 %v303
    %v655 = vunpack.c.l.b16 %v304
    %v656 = vunpack.c.h.b16 %v304
    %v657 = vunpack.c.l.b16 %v305
    %v658 = vunpack.c.h.b16 %v305
    %v659 = vunpack.c.l.b16 %v306
    %v660 = vunpack.c.h.b16 %v306
    %v661 = vunpack.c.l.b16 %v307
    %v662 = vunpack.c.h.b16 %v307
    %v663 = vunpack.c.l.b16 %v308
    %v664 = vunpack.c.h.b16 %v308
    %v665 = vunpack.c.l.b16 %v309
    %v666 = vunpack.c.h.b16 %v309
    %v667 = vunpack.c.l.b16 %v310
    %v668 = vunpack.c.h.b16 %v310
    %v669 = vunpack.c.l.b16 %v311
    %v670 = vunpack.c.h.b16 %v311
    %v671 = vunpack.c.l.b16 %v312
    %v672 = vunpack.c.h.b16 %v312
    %v673 = vunpack.c.l.b16 %v313
    %v674 = vunpack.c.h.b16 %v313
    %v675 = vunpack.c.l.b16 %v314
    %v676 = vunpack.c.h.b16 %v314
    %v677 = vunpack.c.l.b16 %v315
    %v678 = vunpack.c.h.b16 %v315
    %v679 = vunpack.c.l.b16 %v316
    %v680 = vunpack.c.h.b16 %v316
    %v681 = vunpack.c.l.b16 %v317
    %v682 = vunpack.c.h.b16 %v317
    %v683 = vunpack.c.l.b16 %v318
    %v684 = vunpack.c.h.b16 %v318
    %v685 = vunpack.c.l.b16 %v319
    %v686 = vunpack.c.h.b16 %v319
    %v687 = vunpack.c.l.b16 %v320
    %v688 = vunpack.c.h.b16 %v320
    %v689 = vunpack.c.l.b16 %v321
    %v690 = vunpack.c.h.b16 %v321
    %v691 = vunpack.c.l.b16 %v322
    %v692 = vunpack.c.h.b16 %v322
    %v693 = vunpack.c.l.b16 %v323
    %v694 = vunpack.c.h.b16 %v323
    %v695 = vunpack.c.l.b16 %v324
    %v696 = vunpack.c.h.b16 %v324
    %v697 = vunpack.c.l.b16 %v325
    %v698 = vunpack.c.h.b16 %v325
    %v699 = vunpack.c.l.b16 %v326
    %v700 = vunpack.c.h.b16 %v326
    %v701 = vunpack.c.l.b16 %v327
    %v702 = vunpack.c.h.b16 %v327
    %v703 = vunpack.c.l.b16 %v328
    %v704 = vunpack.c.h.b16 %v328
    %v705 = vunpack.c.l.b16 %v329
    %v706 = vunpack.c.h.b16 %v329
    %v707 = vunpack.c.l.b16 %v330
    %v708 = vunpack.c.h.b16 %v330
    %v709 = vunpack.c.l.b16 %v331
    %v710 = vunpack.c.h.b16 %v331
    %v711 = vunpack.c.l.b16 %v332
    %v712 = vunpack.c.h.b16 %v332
    %v713 = vunpack.c.l.b16 %v333
    %v714 = vunpack.c.h.b16 %v333
    %v715 = vunpack.c.l.b16 %v334
    %v716 = vunpack.c.h.b16 %v334
    %v717 = vunpack.c.l.b16 %v335
    %v718 = vunpack.c.h.b16 %v335
    %v719 = vunpack.c.l.b16 %v336
    %v720 = vunpack.c.h.b16 %v336
    %v721 = vunpack.c.l.b16 %v337
    %v722 = vunpack.c.h.b16 %v337
    %v723 = vunpack.c.l.b16 %v338
    %v724 = vunpack.c.h.b16 %v338
    %v725 = vunpack.c.l.b16 %v339
    %v726 = vunpack.c.h.b16 %v339
    %v727 = vunpack.c.l.b16 %v340
    %v728 = vunpack.c.h.b16 %v340
    %v729 = vunpack.c.l.b16 %v341
    %v730 = vunpack.c.h.b16 %v341
    %v731 = vunpack.c.l.b16 %v342
    %v732 = vunpack.c.h.b16 %v342
    %v733 = vunpack.c.l.b16 %v343
    %v734 = vunpack.c.h.b16 %v343
    %v735 = vunpack.c.l.b16 %v344
    %v736 = vunpack.c.h.b16 %v344
    %v737 = vunpack.c.l.b16 %v345
    %v738 = vunpack.c.h.b16 %v345
    %v739 = vunpack.c.l.b16 %v346
    %v740 = vunpack.c.h.b16 %v346
    %v741 = vunpack.c.l.b16 %v347
    %v742 = vunpack.c.h.b16 %v347
    %v743 = vunpack.c.l.b16 %v348
    %v744 = vunpack.c.h.b16 %v348
    %v745 = vunpack.c.l.b16 %v349
    %v746 = vunpack.c.h.b16 %v349
    %v747 = vunpack.c.l.b16 %v350
    %v748 = vunpack.c.h.b16 %v350
    %v749 = vunpack.c.l.b16 %v351
    %v750 = vunpack.c.h.b16 %v351
    %v751 = vunpack.c.l.b16 %v352
    %v752 = vunpack.c.h.b16 %v352
    %v753 = vunpack.c.l.b16 %v353
    %v754 = vunpack.c.h.b16 %v353
    %v755 = vunpack.c.l.b16 %v354
    %v756 = vunpack.c.h.b16 %v354
    %v757 = vunpack.c.l.b16 %v355
    %v758 = vunpack.c.h.b16 %v355
    %v759 = vunpack.c.l.b16 %v356
    %v760 = vunpack.c.h.b16 %v356
    %v761 = vunpack.c.l.b16 %v357
    %v762 = vunpack.c.h.b16 %v357
    %v763 = vunpack.c.l.b16 %v358
    %v764 = vunpack.c.h.b16 %v358
    %v765 = vunpack.c.l.b16 %v359
    %v766 = vunpack.c.h.b16 %v359
    %v767 = vunpack.c.l.b16 %v360
    %v768 = vunpack.c.h.b16 %v360
    %v769 = vunpack.c.l.b16 %v361
    %v770 = vunpack.c.h.b16 %v361
    %v771 = vunpack.c.l.b16 %v362
    %v772 = vunpack.c.h.b16 %v362
    %v773 = vunpack.c.l.b16 %v363
    %v774 = vunpack.c.h.b16 %v363
    %v775 = vunpack.c.l.b16 %v364
    %v776 = vunpack.c.h.b16 %v364
    %v777 = vpack.c.b16 %v523, %v521
    %v778 = vpack.c.b16 %v524, %v522
    %v779 = vpack.c.b16 %v527, %v525
    %v780 = vpack.c.b16 %v528, %v526
    %v781 = vpack.c.b16 %v531, %v529
    %v782 = vpack.c.b16 %v532, %v530
    %v783 = vpack.c.b16 %v535, %v533
    %v784 = vpack.c.b16 %v536, %v534
    %v785 = vpack.c.b16 %v539, %v537
    %v786 = vpack.c.b16 %v540, %v538
    %v787 = vpack.c.b16 %v543, %v541
    %v788 = vpack.c.b16 %v544, %v542
    %v789 = vpack.c.b16 %v547, %v545
    %v790 = vpack.c.b16 %v548, %v546
    %v791 = vpack.c.b16 %v551, %v549
    %v792 = vpack.c.b16 %v552, %v550
    %v793 = vpack.c.b16 %v555, %v553
    %v794 = vpack.c.b16 %v556, %v554
    %v795 = vpack.c.b16 %v559, %v557
    %v796 = vpack.c.b16 %v560, %v558
    %v797 = vpack.c.b16 %v563, %v561
    %v798 = vpack.c.b16 %v564, %v562
    %v799 = vpack.c.b16 %v567, %v565
    %v800 = vpack.c.b16 %v568, %v566
    %v801 = vpack.c.b16 %v571, %v569
    %v802 = vpack.c.b16 %v572, %v570
    %v803 = vpack.c.b16 %v575, %v573
    %v804 = vpack.c.b16 %v576, %v574
    %v805 = vpack.c.b16 %v579, %v577
    %v806 = vpack.c.b16 %v580, %v578
    %v807 = vpack.c.b16 %v583, %v581
    %v808 = vpack.c.b16 %v584, %v582
    %v809 = vpack.c.b16 %v587, %v585
    %v810 = vpack.c.b16 %v588, %v586
    %v811 = vpack.c.b16 %v591, %v589
    %v812 = vpack.c.b16 %v592, %v590
    %v813 = vpack.c.b16 %v595, %v593
    %v814 = vpack.c.b16 %v596, %v594
    %v815 = vpack.c.b16 %v599, %v597
    %v816 = vpack.c.b16 %v600, %v598
    %v817 = vpack.c.b16 %v603, %v601
    %v818 = vpack.c.b16 %v604, %v602
    %v819 = vpack.c.b16 %v607, %v605
    %v820 = vpack.c.b16 %v608, %v606
    %v821 = vpack.c.b16 %v611, %v609
    %v822 = vpack.c.b16 %v612, %v610
    %v823 = vpack.c.b16 %v615, %v613
    %v824 = vpack.c.b16 %v616, %v614
    %v825 = vpack.c.b16 %v619, %v617
    %v826 = vpack.c.b16 %v620, %v618
    %v827 = vpack.c.b16 %v623, %v621
    %v828 = vpack.c.b16 %v624, %v622
    %v829 = vpack.c.b16 %v627, %v625
    %v830 = vpack.c.b16 %v628, %v626
    %v831 = vpack.c.b16 %v631, %v629
    %v832 = vpack.c.b16 %v632, %v630
    %v833 = vpack.c.b16 %v635, %v633
    %v834 = vpack.c.b16 %v636, %v634
    %v835 = vpack.c.b16 %v639, %v637
    %v836 = vpack.c.b16 %v640, %v638
    %v837 = vpack.c.b16 %v643, %v641
    %v838 = vpack.c.b16 %v644, %v642
    %v839 = vpack.c.b16 %v647, %v645
    %v840 = vpack.c.b16 %v648, %v646
    %v841 = vpack.c.b16 %v651, %v649
    %v842 = vpack.c.b16 %v652, %v650
    %v843 = vpack.c.b16 %v655, %v653
    %v844 = vpack.c.b16 %v656, %v654
    %v845 = vpack.c.b16 %v659, %v657
    %v846 = vpack.c.b16 %v660, %v658
    %v847 = vpack.c.b16 %v663, %v661
    %v848 = vpack.c.b16 %v664, %v662
    %v849 = vpack.c.b16 %v667, %v665
    %v850 = vpack.c.b16 %v668, %v666
    %v851 = vpack.c.b16 %v671, %v669
    %v852 = vpack.c.b16 %v672, %v670
    %v853 = vpack.c.b16 %v675, %v673
    %v854 = vpack.c.b16 %v676, %v674
    %v855 = vpack.c.b16 %v679, %v677
    %v856 = vpack.c.b16 %v680, %v678
    %v857 = vpack.c.b16 %v683, %v681
    %v858 = vpack.c.b16 %v684, %v682
    %v859 = vpack.c.b16 %v687, %v685
    %v860 = vpack.c.b16 %v688, %v686
    %v861 = vpack.c.b16 %v691, %v689
    %v862 = vpack.c.b16 %v692, %v690
    %v863 = vpack.c.b16 %v695, %v693
    %v864 = vpack.c.b16 %v696, %v694
    %v865 = vpack.c.b16 %v699, %v697
    %v866 = vpack.c.b16 %v700, %v698
    %v867 = vpack.c.b16 %v703, %v701
    %v868 = vpack.c.b16 %v704, %v702
    %v869 = vpack.c.b16 %v707, %v705
    %v870 = vpack.c.b16 %v708, %v706
    %v871 = vpack.c.b16 %v711, %v709
    %v872 = vpack.c.b16 %v712, %v710
    %v873 = vpack.c.b16 %v715, %v713
    %v874 = vpack.c.b16 %v716, %v714
    %v875 = vpack.c.b16 %v719, %v717
    %v876 = vpack.c.b16 %v720, %v718
    %v877 = vpack.c.b16 %v723, %v721
    %v878 = vpack.c.b16 %v724, %v722
    %v879 = vpack.c.b16 %v727, %v725
    %v880 = vpack.c.b16 %v728, %v726
    %v881 = vpack.c.b16 %v731, %v729
    %v882 = vpack.c.b16 %v732, %v730
    %v883 = vpack.c.b16 %v735, %v733
    %v884 = vpack.c.b16 %v736, %v734
    %v885 = vpack.c.b16 %v739, %v737
    %v886 = vpack.c.b16 %v740, %v738
    %v887 = vpack.c.b16 %v743, %v741
    %v888 = vpack.c.b16 %v744, %v742
    %v889 = vpack.c.b16 %v747, %v745
    %v890 = vpack.c.b16 %v748, %v746
    %v891 = vpack.c.b16 %v751, %v749
    %v892 = vpack.c.b16 %v752, %v750
    %v893 = vpack.c.b16 %v755, %v753
    %v894 = vpack.c.b16 %v756, %v754
    %v895 = vpack.c.b16 %v759, %v757
    %v896 = vpack.c.b16 %v760, %v758
    %v897 = vpack.c.b16 %v763, %v761
    %v898 = vpack.c.b16 %v764, %v762
    %v899 = vpack.c.b16 %v767, %v765
    %v900 = vpack.c.b16 %v768, %v766
    %v901 = vpack.c.b16 %v771, %v769
    %v902 = vpack.c.b16 %v772, %v770
    %v903 = vpack.c.b16 %v775, %v773
    %v904 = vpack.c.b16 %v776, %v774
    %1033 = vmatpush.bf16.msra.mxu0 %v791
    %1034 = vmatpush.bf16.msra.mxu0 %v789
    %1035 = vmatpush.bf16.msra.mxu0 %v787
    %1036 = vmatpush.bf16.msra.mxu0 %v785
    %1037 = vmatpush.bf16.msra.mxu0 %v783
    %1038 = vmatpush.bf16.msra.mxu0 %v781
    %1039 = vmatpush.bf16.msra.mxu0 %v779
    %1040 = vmatpush.bf16.msra.mxu0 %v777
    %1041 = vmatmul.bf16.gmra.mxu0 %v377
    %v1042 = vpop.f32.mrf.mxu0
    %v1043 = vadd.f32 0.0, %v1042
    %v1044 = vpop.f32.mrf.mxu0
    %1045 = vdwg.mxu0
    %1046 = vmatpush.bf16.msra.mxu0 %v807
    %1047 = vmatpush.bf16.msra.mxu0 %v805
    %1048 = vmatpush.bf16.msra.mxu0 %v803
    %1049 = vmatpush.bf16.msra.mxu0 %v801
    %1050 = vmatpush.bf16.msra.mxu0 %v799
    %1051 = vmatpush.bf16.msra.mxu0 %v797
    %1052 = vmatpush.bf16.msra.mxu0 %v795
    %1053 = vmatpush.bf16.msra.mxu0 %v793
    %1054 = vmatmul.bf16.gmra.mxu0 %v378
    %v1055 = vpop.f32.mrf.mxu0
    %v1056 = vadd.f32 %v1043, %v1055
    %v1057 = vpop.f32.mrf.mxu0
    %1058 = vdwg.mxu0
    %1059 = vmatpush.bf16.msra.mxu0 %v823
    %1060 = vmatpush.bf16.msra.mxu0 %v821
    %1061 = vmatpush.bf16.msra.mxu0 %v819
    %1062 = vmatpush.bf16.msra.mxu0 %v817
    %1063 = vmatpush.bf16.msra.mxu0 %v815
    %1064 = vmatpush.bf16.msra.mxu0 %v813
    %1065 = vmatpush.bf16.msra.mxu0 %v811
    %1066 = vmatpush.bf16.msra.mxu0 %v809
    %1067 = vmatmul.bf16.gmra.mxu0 %v379
    %v1068 = vpop.f32.mrf.mxu0
    %v1069 = vadd.f32 %v1056, %v1068
    %v1070 = vpop.f32.mrf.mxu0
    %1071 = vdwg.mxu0
    %1072 = vmatpush.bf16.msra.mxu0 %v839
    %1073 = vmatpush.bf16.msra.mxu0 %v837
    %1074 = vmatpush.bf16.msra.mxu0 %v835
    %1075 = vmatpush.bf16.msra.mxu0 %v833
    %1076 = vmatpush.bf16.msra.mxu0 %v831
    %1077 = vmatpush.bf16.msra.mxu0 %v829
    %1078 = vmatpush.bf16.msra.mxu0 %v827
    %1079 = vmatpush.bf16.msra.mxu0 %v825
    %1080 = vmatmul.bf16.gmra.mxu0 %v380
    %v1081 = vpop.f32.mrf.mxu0
    %v1082 = vadd.f32 %v1069, %v1081
    %v1083 = vpop.f32.mrf.mxu0
    %1084 = vdwg.mxu0
    %1085 = vmatpush.bf16.msra.mxu0 %v855
    %1086 = vmatpush.bf16.msra.mxu0 %v853
    %1087 = vmatpush.bf16.msra.mxu0 %v851
    %1088 = vmatpush.bf16.msra.mxu0 %v849
    %1089 = vmatpush.bf16.msra.mxu0 %v847
    %1090 = vmatpush.bf16.msra.mxu0 %v845
    %1091 = vmatpush.bf16.msra.mxu0 %v843
    %1092 = vmatpush.bf16.msra.mxu0 %v841
    %1093 = vmatmul.bf16.gmra.mxu0 %v381
    %v1094 = vpop.f32.mrf.mxu0
    %v1095 = vadd.f32 %v1082, %v1094
    %v1096 = vpop.f32.mrf.mxu0
    %1097 = vdwg.mxu0
    %1098 = vmatpush.bf16.msra.mxu0 %v871
    %1099 = vmatpush.bf16.msra.mxu0 %v869
    %1100 = vmatpush.bf16.msra.mxu0 %v867
    %1101 = vmatpush.bf16.msra.mxu0 %v865
    %1102 = vmatpush.bf16.msra.mxu0 %v863
    %1103 = vmatpush.bf16.msra.mxu0 %v861
    %1104 = vmatpush.bf16.msra.mxu0 %v859
    %1105 = vmatpush.bf16.msra.mxu0 %v857
    %1106 = vmatmul.bf16.gmra.mxu0 %v382
    %v1107 = vpop.f32.mrf.mxu0
    %v1108 = vadd.f32 %v1095, %v1107
    %v1109 = vpop.f32.mrf.mxu0
    %1110 = vdwg.mxu0
    %1111 = vmatpush.bf16.msra.mxu0 %v887
    %1112 = vmatpush.bf16.msra.mxu0 %v885
    %1113 = vmatpush.bf16.msra.mxu0 %v883
    %1114 = vmatpush.bf16.msra.mxu0 %v881
    %1115 = vmatpush.bf16.msra.mxu0 %v879
    %1116 = vmatpush.bf16.msra.mxu0 %v877
    %1117 = vmatpush.bf16.msra.mxu0 %v875
    %1118 = vmatpush.bf16.msra.mxu0 %v873
    %1119 = vmatmul.bf16.gmra.mxu0 %v383
    %v1120 = vpop.f32.mrf.mxu0
    %v1121 = vadd.f32 %v1108, %v1120
    %v1122 = vpop.f32.mrf.mxu0
    %1123 = vdwg.mxu0
    %1124 = vmatpush.bf16.msra.mxu0 %v903
    %1125 = vmatpush.bf16.msra.mxu0 %v901
    %1126 = vmatpush.bf16.msra.mxu0 %v899
    %1127 = vmatpush.bf16.msra.mxu0 %v897
    %1128 = vmatpush.bf16.msra.mxu0 %v895
    %1129 = vmatpush.bf16.msra.mxu0 %v893
    %1130 = vmatpush.bf16.msra.mxu0 %v891
    %1131 = vmatpush.bf16.msra.mxu0 %v889
    %1132 = vmatmul.bf16.gmra.mxu0 %v384
    %v1133 = vpop.f32.mrf.mxu0
    %v1134 = vadd.f32 %v1121, %v1133
    %v1135 = vpop.f32.mrf.mxu0
    %1136 = vdwg.mxu0
    %1137 = vmatpush.bf16.msra.mxu0 %v792
    %1138 = vmatpush.bf16.msra.mxu0 %v790
    %1139 = vmatpush.bf16.msra.mxu0 %v788
    %1140 = vmatpush.bf16.msra.mxu0 %v786
    %1141 = vmatpush.bf16.msra.mxu0 %v784
    %1142 = vmatpush.bf16.msra.mxu0 %v782
    %1143 = vmatpush.bf16.msra.mxu0 %v780
    %1144 = vmatpush.bf16.msra.mxu0 %v778
    %1145 = vmatmul.bf16.gmra.mxu0 %v377
    %v1146 = vpop.f32.mrf.mxu0
    %v1147 = vadd.f32 0.0, %v1146
    %v1148 = vpop.f32.mrf.mxu0
    %1149 = vdwg.mxu0
    %1150 = vmatpush.bf16.msra.mxu0 %v808
    %1151 = vmatpush.bf16.msra.mxu0 %v806
    %1152 = vmatpush.bf16.msra.mxu0 %v804
    %1153 = vmatpush.bf16.msra.mxu0 %v802
    %1154 = vmatpush.bf16.msra.mxu0 %v800
    %1155 = vmatpush.bf16.msra.mxu0 %v798
    %1156 = vmatpush.bf16.msra.mxu0 %v796
    %1157 = vmatpush.bf16.msra.mxu0 %v794
    %1158 = vmatmul.bf16.gmra.mxu0 %v378
    %v1159 = vpop.f32.mrf.mxu0
    %v1160 = vadd.f32 %v1147, %v1159
    %v1161 = vpop.f32.mrf.mxu0
    %1162 = vdwg.mxu0
    %1163 = vmatpush.bf16.msra.mxu0 %v824
    %1164 = vmatpush.bf16.msra.mxu0 %v822
    %1165 = vmatpush.bf16.msra.mxu0 %v820
    %1166 = vmatpush.bf16.msra.mxu0 %v818
    %1167 = vmatpush.bf16.msra.mxu0 %v816
    %1168 = vmatpush.bf16.msra.mxu0 %v814
    %1169 = vmatpush.bf16.msra.mxu0 %v812
    %1170 = vmatpush.bf16.msra.mxu0 %v810
    %1171 = vmatmul.bf16.gmra.mxu0 %v379
    %v1172 = vpop.f32.mrf.mxu0
    %v1173 = vadd.f32 %v1160, %v1172
    %v1174 = vpop.f32.mrf.mxu0
    %1175 = vdwg.mxu0
    %1176 = vmatpush.bf16.msra.mxu0 %v840
    %1177 = vmatpush.bf16.msra.mxu0 %v838
    %1178 = vmatpush.bf16.msra.mxu0 %v836
    %1179 = vmatpush.bf16.msra.mxu0 %v834
    %1180 = vmatpush.bf16.msra.mxu0 %v832
    %1181 = vmatpush.bf16.msra.mxu0 %v830
    %1182 = vmatpush.bf16.msra.mxu0 %v828
    %1183 = vmatpush.bf16.msra.mxu0 %v826
    %1184 = vmatmul.bf16.gmra.mxu0 %v380
    %v1185 = vpop.f32.mrf.mxu0
    %v1186 = vadd.f32 %v1173, %v1185
    %v1187 = vpop.f32.mrf.mxu0
    %1188 = vdwg.mxu0
    %1189 = vmatpush.bf16.msra.mxu0 %v856
    %1190 = vmatpush.bf16.msra.mxu0 %v854
    %1191 = vmatpush.bf16.msra.mxu0 %v852
    %1192 = vmatpush.bf16.msra.mxu0 %v850
    %1193 = vmatpush.bf16.msra.mxu0 %v848
    %1194 = vmatpush.bf16.msra.mxu0 %v846
    %1195 = vmatpush.bf16.msra.mxu0 %v844
    %1196 = vmatpush.bf16.msra.mxu0 %v842
    %1197 = vmatmul.bf16.gmra.mxu0 %v381
    %v1198 = vpop.f32.mrf.mxu0
    %v1199 = vadd.f32 %v1186, %v1198
    %v1200 = vpop.f32.mrf.mxu0
    %1201 = vdwg.mxu0
    %1202 = vmatpush.bf16.msra.mxu0 %v872
    %1203 = vmatpush.bf16.msra.mxu0 %v870
    %1204 = vmatpush.bf16.msra.mxu0 %v868
    %1205 = vmatpush.bf16.msra.mxu0 %v866
    %1206 = vmatpush.bf16.msra.mxu0 %v864
    %1207 = vmatpush.bf16.msra.mxu0 %v862
    %1208 = vmatpush.bf16.msra.mxu0 %v860
    %1209 = vmatpush.bf16.msra.mxu0 %v858
    %1210 = vmatmul.bf16.gmra.mxu0 %v382
    %v1211 = vpop.f32.mrf.mxu0
    %v1212 = vadd.f32 %v1199, %v1211
    %v1213 = vpop.f32.mrf.mxu0
    %1214 = vdwg.mxu0
    %1215 = vmatpush.bf16.msra.mxu0 %v888
    %1216 = vmatpush.bf16.msra.mxu0 %v886
    %1217 = vmatpush.bf16.msra.mxu0 %v884
    %1218 = vmatpush.bf16.msra.mxu0 %v882
    %1219 = vmatpush.bf16.msra.mxu0 %v880
    %1220 = vmatpush.bf16.msra.mxu0 %v878
    %1221 = vmatpush.bf16.msra.mxu0 %v876
    %1222 = vmatpush.bf16.msra.mxu0 %v874
    %1223 = vmatmul.bf16.gmra.mxu0 %v383
    %v1224 = vpop.f32.mrf.mxu0
    %v1225 = vadd.f32 %v1212, %v1224
    %v1226 = vpop.f32.mrf.mxu0
    %1227 = vdwg.mxu0
    %1228 = vmatpush.bf16.msra.mxu0 %v904
    %1229 = vmatpush.bf16.msra.mxu0 %v902
    %1230 = vmatpush.bf16.msra.mxu0 %v900
    %1231 = vmatpush.bf16.msra.mxu0 %v898
    %1232 = vmatpush.bf16.msra.mxu0 %v896
    %1233 = vmatpush.bf16.msra.mxu0 %v894
    %1234 = vmatpush.bf16.msra.mxu0 %v892
    %1235 = vmatpush.bf16.msra.mxu0 %v890
    %1236 = vmatmul.bf16.gmra.mxu0 %v384
    %v1237 = vpop.f32.mrf.mxu0
    %v1238 = vadd.f32 %v1225, %v1237
    %v1239 = vpop.f32.mrf.mxu0
    %1240 = vdwg.mxu0
    %v1245 = vunpack.c.l.b16 %v101
    %v1246 = vunpack.c.h.b16 %v101
    %v1247 = vunpack.c.l.b16 %v102
    %v1248 = vunpack.c.h.b16 %v102
    %v1249 = vunpack.c.l.b16 %v103
    %v1250 = vunpack.c.h.b16 %v103
    %v1251 = vunpack.c.l.b16 %v104
    %v1252 = vunpack.c.h.b16 %v104
    %v1253 = vpack.c.b16 %v1245, %v1245
    %v1254 = vpack.c.b16 %v1246, %v1246
    %v1255 = vpack.c.b16 %v1247, %v1247
    %v1256 = vpack.c.b16 %v1248, %v1248
    %v1257 = vpack.c.b16 %v1249, %v1249
    %v1258 = vpack.c.b16 %v1250, %v1250
    %v1259 = vpack.c.b16 %v1251, %v1251
    %v1260 = vpack.c.b16 %v1252, %v1252
    %v1397 = vunpack.c.l.b16 %v105
    %v1398 = vunpack.c.h.b16 %v105
    %v1399 = vunpack.c.l.b16 %v106
    %v1400 = vunpack.c.h.b16 %v106
    %v1401 = vunpack.c.l.b16 %v107
    %v1402 = vunpack.c.h.b16 %v107
    %v1403 = vunpack.c.l.b16 %v108
    %v1404 = vunpack.c.h.b16 %v108
    %v1405 = vunpack.c.l.b16 %v109
    %v1406 = vunpack.c.h.b16 %v109
    %v1407 = vunpack.c.l.b16 %v110
    %v1408 = vunpack.c.h.b16 %v110
    %v1409 = vunpack.c.l.b16 %v111
    %v1410 = vunpack.c.h.b16 %v111
    %v1411 = vunpack.c.l.b16 %v112
    %v1412 = vunpack.c.h.b16 %v112
    %v1413 = vunpack.c.l.b16 %v113
    %v1414 = vunpack.c.h.b16 %v113
    %v1415 = vunpack.c.l.b16 %v114
    %v1416 = vunpack.c.h.b16 %v114
    %v1417 = vunpack.c.l.b16 %v115
    %v1418 = vunpack.c.h.b16 %v115
    %v1419 = vunpack.c.l.b16 %v116
    %v1420 = vunpack.c.h.b16 %v116
    %v1421 = vunpack.c.l.b16 %v117
    %v1422 = vunpack.c.h.b16 %v117
    %v1423 = vunpack.c.l.b16 %v118
    %v1424 = vunpack.c.h.b16 %v118
    %v1425 = vunpack.c.l.b16 %v119
    %v1426 = vunpack.c.h.b16 %v119
    %v1427 = vunpack.c.l.b16 %v120
    %v1428 = vunpack.c.h.b16 %v120
    %v1429 = vunpack.c.l.b16 %v121
    %v1430 = vunpack.c.h.b16 %v121
    %v1431 = vunpack.c.l.b16 %v122
    %v1432 = vunpack.c.h.b16 %v122
    %v1433 = vunpack.c.l.b16 %v123
    %v1434 = vunpack.c.h.b16 %v123
    %v1435 = vunpack.c.l.b16 %v124
    %v1436 = vunpack.c.h.b16 %v124
    %v1437 = vunpack.c.l.b16 %v125
    %v1438 = vunpack.c.h.b16 %v125
    %v1439 = vunpack.c.l.b16 %v126
    %v1440 = vunpack.c.h.b16 %v126
    %v1441 = vunpack.c.l.b16 %v127
    %v1442 = vunpack.c.h.b16 %v127
    %v1443 = vunpack.c.l.b16 %v128
    %v1444 = vunpack.c.h.b16 %v128
    %v1445 = vunpack.c.l.b16 %v129
    %v1446 = vunpack.c.h.b16 %v129
    %v1447 = vunpack.c.l.b16 %v130
    %v1448 = vunpack.c.h.b16 %v130
    %v1449 = vunpack.c.l.b16 %v131
    %v1450 = vunpack.c.h.b16 %v131
    %v1451 = vunpack.c.l.b16 %v132
    %v1452 = vunpack.c.h.b16 %v132
    %v1453 = vunpack.c.l.b16 %v133
    %v1454 = vunpack.c.h.b16 %v133
    %v1455 = vunpack.c.l.b16 %v134
    %v1456 = vunpack.c.h.b16 %v134
    %v1457 = vunpack.c.l.b16 %v135
    %v1458 = vunpack.c.h.b16 %v135
    %v1459 = vunpack.c.l.b16 %v136
    %v1460 = vunpack.c.h.b16 %v136
    %v1461 = vunpack.c.l.b16 %v137
    %v1462 = vunpack.c.h.b16 %v137
    %v1463 = vunpack.c.l.b16 %v138
    %v1464 = vunpack.c.h.b16 %v138
    %v1465 = vunpack.c.l.b16 %v139
    %v1466 = vunpack.c.h.b16 %v139
    %v1467 = vunpack.c.l.b16 %v140
    %v1468 = vunpack.c.h.b16 %v140
    %v1469 = vunpack.c.l.b16 %v141
    %v1470 = vunpack.c.h.b16 %v141
    %v1471 = vunpack.c.l.b16 %v142
    %v1472 = vunpack.c.h.b16 %v142
    %v1473 = vunpack.c.l.b16 %v143
    %v1474 = vunpack.c.h.b16 %v143
    %v1475 = vunpack.c.l.b16 %v144
    %v1476 = vunpack.c.h.b16 %v144
    %v1477 = vunpack.c.l.b16 %v145
    %v1478 = vunpack.c.h.b16 %v145
    %v1479 = vunpack.c.l.b16 %v146
    %v1480 = vunpack.c.h.b16 %v146
    %v1481 = vunpack.c.l.b16 %v147
    %v1482 = vunpack.c.h.b16 %v147
    %v1483 = vunpack.c.l.b16 %v148
    %v1484 = vunpack.c.h.b16 %v148
    %v1485 = vunpack.c.l.b16 %v149
    %v1486 = vunpack.c.h.b16 %v149
    %v1487 = vunpack.c.l.b16 %v150
    %v1488 = vunpack.c.h.b16 %v150
    %v1489 = vunpack.c.l.b16 %v151
    %v1490 = vunpack.c.h.b16 %v151
    %v1491 = vunpack.c.l.b16 %v152
    %v1492 = vunpack.c.h.b16 %v152
    %v1493 = vunpack.c.l.b16 %v153
    %v1494 = vunpack.c.h.b16 %v153
    %v1495 = vunpack.c.l.b16 %v154
    %v1496 = vunpack.c.h.b16 %v154
    %v1497 = vunpack.c.l.b16 %v155
    %v1498 = vunpack.c.h.b16 %v155
    %v1499 = vunpack.c.l.b16 %v156
    %v1500 = vunpack.c.h.b16 %v156
    %v1501 = vunpack.c.l.b16 %v157
    %v1502 = vunpack.c.h.b16 %v157
    %v1503 = vunpack.c.l.b16 %v158
    %v1504 = vunpack.c.h.b16 %v158
    %v1505 = vunpack.c.l.b16 %v159
    %v1506 = vunpack.c.h.b16 %v159
    %v1507 = vunpack.c.l.b16 %v160
    %v1508 = vunpack.c.h.b16 %v160
    %v1509 = vunpack.c.l.b16 %v161
    %v1510 = vunpack.c.h.b16 %v161
    %v1511 = vunpack.c.l.b16 %v162
    %v1512 = vunpack.c.h.b16 %v162
    %v1513 = vunpack.c.l.b16 %v163
    %v1514 = vunpack.c.h.b16 %v163
    %v1515 = vunpack.c.l.b16 %v164
    %v1516 = vunpack.c.h.b16 %v164
    %v1517 = vunpack.c.l.b16 %v165
    %v1518 = vunpack.c.h.b16 %v165
    %v1519 = vunpack.c.l.b16 %v166
    %v1520 = vunpack.c.h.b16 %v166
    %v1521 = vunpack.c.l.b16 %v167
    %v1522 = vunpack.c.h.b16 %v167
    %v1523 = vunpack.c.l.b16 %v168
    %v1524 = vunpack.c.h.b16 %v168
    %v1525 = vunpack.c.l.b16 %v169
    %v1526 = vunpack.c.h.b16 %v169
    %v1527 = vunpack.c.l.b16 %v170
    %v1528 = vunpack.c.h.b16 %v170
    %v1529 = vunpack.c.l.b16 %v171
    %v1530 = vunpack.c.h.b16 %v171
    %v1531 = vunpack.c.l.b16 %v172
    %v1532 = vunpack.c.h.b16 %v172
    %v1533 = vunpack.c.l.b16 %v173
    %v1534 = vunpack.c.h.b16 %v173
    %v1535 = vunpack.c.l.b16 %v174
    %v1536 = vunpack.c.h.b16 %v174
    %v1537 = vunpack.c.l.b16 %v175
    %v1538 = vunpack.c.h.b16 %v175
    %v1539 = vunpack.c.l.b16 %v176
    %v1540 = vunpack.c.h.b16 %v176
    %v1541 = vunpack.c.l.b16 %v177
    %v1542 = vunpack.c.h.b16 %v177
    %v1543 = vunpack.c.l.b16 %v178
    %v1544 = vunpack.c.h.b16 %v178
    %v1545 = vunpack.c.l.b16 %v179
    %v1546 = vunpack.c.h.b16 %v179
    %v1547 = vunpack.c.l.b16 %v180
    %v1548 = vunpack.c.h.b16 %v180
    %v1549 = vunpack.c.l.b16 %v181
    %v1550 = vunpack.c.h.b16 %v181
    %v1551 = vunpack.c.l.b16 %v182
    %v1552 = vunpack.c.h.b16 %v182
    %v1553 = vunpack.c.l.b16 %v183
    %v1554 = vunpack.c.h.b16 %v183
    %v1555 = vunpack.c.l.b16 %v184
    %v1556 = vunpack.c.h.b16 %v184
    %v1557 = vunpack.c.l.b16 %v185
    %v1558 = vunpack.c.h.b16 %v185
    %v1559 = vunpack.c.l.b16 %v186
    %v1560 = vunpack.c.h.b16 %v186
    %v1561 = vunpack.c.l.b16 %v187
    %v1562 = vunpack.c.h.b16 %v187
    %v1563 = vunpack.c.l.b16 %v188
    %v1564 = vunpack.c.h.b16 %v188
    %v1565 = vunpack.c.l.b16 %v189
    %v1566 = vunpack.c.h.b16 %v189
    %v1567 = vunpack.c.l.b16 %v190
    %v1568 = vunpack.c.h.b16 %v190
    %v1569 = vunpack.c.l.b16 %v191
    %v1570 = vunpack.c.h.b16 %v191
    %v1571 = vunpack.c.l.b16 %v192
    %v1572 = vunpack.c.h.b16 %v192
    %v1573 = vunpack.c.l.b16 %v193
    %v1574 = vunpack.c.h.b16 %v193
    %v1575 = vunpack.c.l.b16 %v194
    %v1576 = vunpack.c.h.b16 %v194
    %v1577 = vunpack.c.l.b16 %v195
    %v1578 = vunpack.c.h.b16 %v195
    %v1579 = vunpack.c.l.b16 %v196
    %v1580 = vunpack.c.h.b16 %v196
    %v1581 = vunpack.c.l.b16 %v197
    %v1582 = vunpack.c.h.b16 %v197
    %v1583 = vunpack.c.l.b16 %v198
    %v1584 = vunpack.c.h.b16 %v198
    %v1585 = vunpack.c.l.b16 %v199
    %v1586 = vunpack.c.h.b16 %v199
    %v1587 = vunpack.c.l.b16 %v200
    %v1588 = vunpack.c.h.b16 %v200
    %v1589 = vunpack.c.l.b16 %v201
    %v1590 = vunpack.c.h.b16 %v201
    %v1591 = vunpack.c.l.b16 %v202
    %v1592 = vunpack.c.h.b16 %v202
    %v1593 = vunpack.c.l.b16 %v203
    %v1594 = vunpack.c.h.b16 %v203
    %v1595 = vunpack.c.l.b16 %v204
    %v1596 = vunpack.c.h.b16 %v204
    %v1597 = vunpack.c.l.b16 %v205
    %v1598 = vunpack.c.h.b16 %v205
    %v1599 = vunpack.c.l.b16 %v206
    %v1600 = vunpack.c.h.b16 %v206
    %v1601 = vunpack.c.l.b16 %v207
    %v1602 = vunpack.c.h.b16 %v207
    %v1603 = vunpack.c.l.b16 %v208
    %v1604 = vunpack.c.h.b16 %v208
    %v1605 = vunpack.c.l.b16 %v209
    %v1606 = vunpack.c.h.b16 %v209
    %v1607 = vunpack.c.l.b16 %v210
    %v1608 = vunpack.c.h.b16 %v210
    %v1609 = vunpack.c.l.b16 %v211
    %v1610 = vunpack.c.h.b16 %v211
    %v1611 = vunpack.c.l.b16 %v212
    %v1612 = vunpack.c.h.b16 %v212
    %v1613 = vunpack.c.l.b16 %v213
    %v1614 = vunpack.c.h.b16 %v213
    %v1615 = vunpack.c.l.b16 %v214
    %v1616 = vunpack.c.h.b16 %v214
    %v1617 = vunpack.c.l.b16 %v215
    %v1618 = vunpack.c.h.b16 %v215
    %v1619 = vunpack.c.l.b16 %v216
    %v1620 = vunpack.c.h.b16 %v216
    %v1621 = vunpack.c.l.b16 %v217
    %v1622 = vunpack.c.h.b16 %v217
    %v1623 = vunpack.c.l.b16 %v218
    %v1624 = vunpack.c.h.b16 %v218
    %v1625 = vunpack.c.l.b16 %v219
    %v1626 = vunpack.c.h.b16 %v219
    %v1627 = vunpack.c.l.b16 %v220
    %v1628 = vunpack.c.h.b16 %v220
    %v1629 = vunpack.c.l.b16 %v221
    %v1630 = vunpack.c.h.b16 %v221
    %v1631 = vunpack.c.l.b16 %v222
    %v1632 = vunpack.c.h.b16 %v222
    %v1633 = vunpack.c.l.b16 %v223
    %v1634 = vunpack.c.h.b16 %v223
    %v1635 = vunpack.c.l.b16 %v224
    %v1636 = vunpack.c.h.b16 %v224
    %v1637 = vunpack.c.l.b16 %v225
    %v1638 = vunpack.c.h.b16 %v225
    %v1639 = vunpack.c.l.b16 %v226
    %v1640 = vunpack.c.h.b16 %v226
    %v1641 = vunpack.c.l.b16 %v227
    %v1642 = vunpack.c.h.b16 %v227
    %v1643 = vunpack.c.l.b16 %v228
    %v1644 = vunpack.c.h.b16 %v228
    %v1645 = vunpack.c.l.b16 %v229
    %v1646 = vunpack.c.h.b16 %v229
    %v1647 = vunpack.c.l.b16 %v230
    %v1648 = vunpack.c.h.b16 %v230
    %v1649 = vunpack.c.l.b16 %v231
    %v1650 = vunpack.c.h.b16 %v231
    %v1651 = vunpack.c.l.b16 %v232
    %v1652 = vunpack.c.h.b16 %v232
    %v1653 = vpack.c.b16 %v1399, %v1397
    %v1654 = vpack.c.b16 %v1400, %v1398
    %v1655 = vpack.c.b16 %v1403, %v1401
    %v1656 = vpack.c.b16 %v1404, %v1402
    %v1657 = vpack.c.b16 %v1407, %v1405
    %v1658 = vpack.c.b16 %v1408, %v1406
    %v1659 = vpack.c.b16 %v1411, %v1409
    %v1660 = vpack.c.b16 %v1412, %v1410
    %v1661 = vpack.c.b16 %v1415, %v1413
    %v1662 = vpack.c.b16 %v1416, %v1414
    %v1663 = vpack.c.b16 %v1419, %v1417
    %v1664 = vpack.c.b16 %v1420, %v1418
    %v1665 = vpack.c.b16 %v1423, %v1421
    %v1666 = vpack.c.b16 %v1424, %v1422
    %v1667 = vpack.c.b16 %v1427, %v1425
    %v1668 = vpack.c.b16 %v1428, %v1426
    %v1669 = vpack.c.b16 %v1431, %v1429
    %v1670 = vpack.c.b16 %v1432, %v1430
    %v1671 = vpack.c.b16 %v1435, %v1433
    %v1672 = vpack.c.b16 %v1436, %v1434
    %v1673 = vpack.c.b16 %v1439, %v1437
    %v1674 = vpack.c.b16 %v1440, %v1438
    %v1675 = vpack.c.b16 %v1443, %v1441
    %v1676 = vpack.c.b16 %v1444, %v1442
    %v1677 = vpack.c.b16 %v1447, %v1445
    %v1678 = vpack.c.b16 %v1448, %v1446
    %v1679 = vpack.c.b16 %v1451, %v1449
    %v1680 = vpack.c.b16 %v1452, %v1450
    %v1681 = vpack.c.b16 %v1455, %v1453
    %v1682 = vpack.c.b16 %v1456, %v1454
    %v1683 = vpack.c.b16 %v1459, %v1457
    %v1684 = vpack.c.b16 %v1460, %v1458
    %v1685 = vpack.c.b16 %v1463, %v1461
    %v1686 = vpack.c.b16 %v1464, %v1462
    %v1687 = vpack.c.b16 %v1467, %v1465
    %v1688 = vpack.c.b16 %v1468, %v1466
    %v1689 = vpack.c.b16 %v1471, %v1469
    %v1690 = vpack.c.b16 %v1472, %v1470
    %v1691 = vpack.c.b16 %v1475, %v1473
    %v1692 = vpack.c.b16 %v1476, %v1474
    %v1693 = vpack.c.b16 %v1479, %v1477
    %v1694 = vpack.c.b16 %v1480, %v1478
    %v1695 = vpack.c.b16 %v1483, %v1481
    %v1696 = vpack.c.b16 %v1484, %v1482
    %v1697 = vpack.c.b16 %v1487, %v1485
    %v1698 = vpack.c.b16 %v1488, %v1486
    %v1699 = vpack.c.b16 %v1491, %v1489
    %v1700 = vpack.c.b16 %v1492, %v1490
    %v1701 = vpack.c.b16 %v1495, %v1493
    %v1702 = vpack.c.b16 %v1496, %v1494
    %v1703 = vpack.c.b16 %v1499, %v1497
    %v1704 = vpack.c.b16 %v1500, %v1498
    %v1705 = vpack.c.b16 %v1503, %v1501
    %v1706 = vpack.c.b16 %v1504, %v1502
    %v1707 = vpack.c.b16 %v1507, %v1505
    %v1708 = vpack.c.b16 %v1508, %v1506
    %v1709 = vpack.c.b16 %v1511, %v1509
    %v1710 = vpack.c.b16 %v1512, %v1510
    %v1711 = vpack.c.b16 %v1515, %v1513
    %v1712 = vpack.c.b16 %v1516, %v1514
    %v1713 = vpack.c.b16 %v1519, %v1517
    %v1714 = vpack.c.b16 %v1520, %v1518
    %v1715 = vpack.c.b16 %v1523, %v1521
    %v1716 = vpack.c.b16 %v1524, %v1522
    %v1717 = vpack.c.b16 %v1527, %v1525
    %v1718 = vpack.c.b16 %v1528, %v1526
    %v1719 = vpack.c.b16 %v1531, %v1529
    %v1720 = vpack.c.b16 %v1532, %v1530
    %v1721 = vpack.c.b16 %v1535, %v1533
    %v1722 = vpack.c.b16 %v1536, %v1534
    %v1723 = vpack.c.b16 %v1539, %v1537
    %v1724 = vpack.c.b16 %v1540, %v1538
    %v1725 = vpack.c.b16 %v1543, %v1541
    %v1726 = vpack.c.b16 %v1544, %v1542
    %v1727 = vpack.c.b16 %v1547, %v1545
    %v1728 = vpack.c.b16 %v1548, %v1546
    %v1729 = vpack.c.b16 %v1551, %v1549
    %v1730 = vpack.c.b16 %v1552, %v1550
    %v1731 = vpack.c.b16 %v1555, %v1553
    %v1732 = vpack.c.b16 %v1556, %v1554
    %v1733 = vpack.c.b16 %v1559, %v1557
    %v1734 = vpack.c.b16 %v1560, %v1558
    %v1735 = vpack.c.b16 %v1563, %v1561
    %v1736 = vpack.c.b16 %v1564, %v1562
    %v1737 = vpack.c.b16 %v1567, %v1565
    %v1738 = vpack.c.b16 %v1568, %v1566
    %v1739 = vpack.c.b16 %v1571, %v1569
    %v1740 = vpack.c.b16 %v1572, %v1570
    %v1741 = vpack.c.b16 %v1575, %v1573
    %v1742 = vpack.c.b16 %v1576, %v1574
    %v1743 = vpack.c.b16 %v1579, %v1577
    %v1744 = vpack.c.b16 %v1580, %v1578
    %v1745 = vpack.c.b16 %v1583, %v1581
    %v1746 = vpack.c.b16 %v1584, %v1582
    %v1747 = vpack.c.b16 %v1587, %v1585
    %v1748 = vpack.c.b16 %v1588, %v1586
    %v1749 = vpack.c.b16 %v1591, %v1589
    %v1750 = vpack.c.b16 %v1592, %v1590
    %v1751 = vpack.c.b16 %v1595, %v1593
    %v1752 = vpack.c.b16 %v1596, %v1594
    %v1753 = vpack.c.b16 %v1599, %v1597
    %v1754 = vpack.c.b16 %v1600, %v1598
    %v1755 = vpack.c.b16 %v1603, %v1601
    %v1756 = vpack.c.b16 %v1604, %v1602
    %v1757 = vpack.c.b16 %v1607, %v1605
    %v1758 = vpack.c.b16 %v1608, %v1606
    %v1759 = vpack.c.b16 %v1611, %v1609
    %v1760 = vpack.c.b16 %v1612, %v1610
    %v1761 = vpack.c.b16 %v1615, %v1613
    %v1762 = vpack.c.b16 %v1616, %v1614
    %v1763 = vpack.c.b16 %v1619, %v1617
    %v1764 = vpack.c.b16 %v1620, %v1618
    %v1765 = vpack.c.b16 %v1623, %v1621
    %v1766 = vpack.c.b16 %v1624, %v1622
    %v1767 = vpack.c.b16 %v1627, %v1625
    %v1768 = vpack.c.b16 %v1628, %v1626
    %v1769 = vpack.c.b16 %v1631, %v1629
    %v1770 = vpack.c.b16 %v1632, %v1630
    %v1771 = vpack.c.b16 %v1635, %v1633
    %v1772 = vpack.c.b16 %v1636, %v1634
    %v1773 = vpack.c.b16 %v1639, %v1637
    %v1774 = vpack.c.b16 %v1640, %v1638
    %v1775 = vpack.c.b16 %v1643, %v1641
    %v1776 = vpack.c.b16 %v1644, %v1642
    %v1777 = vpack.c.b16 %v1647, %v1645
    %v1778 = vpack.c.b16 %v1648, %v1646
    %v1779 = vpack.c.b16 %v1651, %v1649
    %v1780 = vpack.c.b16 %v1652, %v1650
    %1909 = vmatpush.bf16.msra.mxu0 %v1667
    %1910 = vmatpush.bf16.msra.mxu0 %v1665
    %1911 = vmatpush.bf16.msra.mxu0 %v1663
    %1912 = vmatpush.bf16.msra.mxu0 %v1661
    %1913 = vmatpush.bf16.msra.mxu0 %v1659
    %1914 = vmatpush.bf16.msra.mxu0 %v1657
    %1915 = vmatpush.bf16.msra.mxu0 %v1655
    %1916 = vmatpush.bf16.msra.mxu0 %v1653
    %1917 = vmatmul.bf16.gmra.mxu0 %v1253
    %v1918 = vpop.f32.mrf.mxu0
    %v1919 = vadd.f32 %v1134, %v1918
    %v1920 = vpop.f32.mrf.mxu0
    %1921 = vdwg.mxu0
    %1922 = vmatpush.bf16.msra.mxu0 %v1683
    %1923 = vmatpush.bf16.msra.mxu0 %v1681
    %1924 = vmatpush.bf16.msra.mxu0 %v1679
    %1925 = vmatpush.bf16.msra.mxu0 %v1677
    %1926 = vmatpush.bf16.msra.mxu0 %v1675
    %1927 = vmatpush.bf16.msra.mxu0 %v1673
    %1928 = vmatpush.bf16.msra.mxu0 %v1671
    %1929 = vmatpush.bf16.msra.mxu0 %v1669
    %1930 = vmatmul.bf16.gmra.mxu0 %v1254
    %v1931 = vpop.f32.mrf.mxu0
    %v1932 = vadd.f32 %v1919, %v1931
    %v1933 = vpop.f32.mrf.mxu0
    %1934 = vdwg.mxu0
    %1935 = vmatpush.bf16.msra.mxu0 %v1699
    %1936 = vmatpush.bf16.msra.mxu0 %v1697
    %1937 = vmatpush.bf16.msra.mxu0 %v1695
    %1938 = vmatpush.bf16.msra.mxu0 %v1693
    %1939 = vmatpush.bf16.msra.mxu0 %v1691
    %1940 = vmatpush.bf16.msra.mxu0 %v1689
    %1941 = vmatpush.bf16.msra.mxu0 %v1687
    %1942 = vmatpush.bf16.msra.mxu0 %v1685
    %1943 = vmatmul.bf16.gmra.mxu0 %v1255
    %v1944 = vpop.f32.mrf.mxu0
    %v1945 = vadd.f32 %v1932, %v1944
    %v1946 = vpop.f32.mrf.mxu0
    %1947 = vdwg.mxu0
    %1948 = vmatpush.bf16.msra.mxu0 %v1715
    %1949 = vmatpush.bf16.msra.mxu0 %v1713
    %1950 = vmatpush.bf16.msra.mxu0 %v1711
    %1951 = vmatpush.bf16.msra.mxu0 %v1709
    %1952 = vmatpush.bf16.msra.mxu0 %v1707
    %1953 = vmatpush.bf16.msra.mxu0 %v1705
    %1954 = vmatpush.bf16.msra.mxu0 %v1703
    %1955 = vmatpush.bf16.msra.mxu0 %v1701
    %1956 = vmatmul.bf16.gmra.mxu0 %v1256
    %v1957 = vpop.f32.mrf.mxu0
    %v1958 = vadd.f32 %v1945, %v1957
    %v1959 = vpop.f32.mrf.mxu0
    %1960 = vdwg.mxu0
    %1961 = vmatpush.bf16.msra.mxu0 %v1731
    %1962 = vmatpush.bf16.msra.mxu0 %v1729
    %1963 = vmatpush.bf16.msra.mxu0 %v1727
    %1964 = vmatpush.bf16.msra.mxu0 %v1725
    %1965 = vmatpush.bf16.msra.mxu0 %v1723
    %1966 = vmatpush.bf16.msra.mxu0 %v1721
    %1967 = vmatpush.bf16.msra.mxu0 %v1719
    %1968 = vmatpush.bf16.msra.mxu0 %v1717
    %1969 = vmatmul.bf16.gmra.mxu0 %v1257
    %v1970 = vpop.f32.mrf.mxu0
    %v1971 = vadd.f32 %v1958, %v1970
    %v1972 = vpop.f32.mrf.mxu0
    %1973 = vdwg.mxu0
    %1974 = vmatpush.bf16.msra.mxu0 %v1747
    %1975 = vmatpush.bf16.msra.mxu0 %v1745
    %1976 = vmatpush.bf16.msra.mxu0 %v1743
    %1977 = vmatpush.bf16.msra.mxu0 %v1741
    %1978 = vmatpush.bf16.msra.mxu0 %v1739
    %1979 = vmatpush.bf16.msra.mxu0 %v1737
    %1980 = vmatpush.bf16.msra.mxu0 %v1735
    %1981 = vmatpush.bf16.msra.mxu0 %v1733
    %1982 = vmatmul.bf16.gmra.mxu0 %v1258
    %v1983 = vpop.f32.mrf.mxu0
    %v1984 = vadd.f32 %v1971, %v1983
    %v1985 = vpop.f32.mrf.mxu0
    %1986 = vdwg.mxu0
    %1987 = vmatpush.bf16.msra.mxu0 %v1763
    %1988 = vmatpush.bf16.msra.mxu0 %v1761
    %1989 = vmatpush.bf16.msra.mxu0 %v1759
    %1990 = vmatpush.bf16.msra.mxu0 %v1757
    %1991 = vmatpush.bf16.msra.mxu0 %v1755
    %1992 = vmatpush.bf16.msra.mxu0 %v1753
    %1993 = vmatpush.bf16.msra.mxu0 %v1751
    %1994 = vmatpush.bf16.msra.mxu0 %v1749
    %1995 = vmatmul.bf16.gmra.mxu0 %v1259
    %v1996 = vpop.f32.mrf.mxu0
    %v1997 = vadd.f32 %v1984, %v1996
    %v1998 = vpop.f32.mrf.mxu0
    %1999 = vdwg.mxu0
    %2000 = vmatpush.bf16.msra.mxu0 %v1779
    %2001 = vmatpush.bf16.msra.mxu0 %v1777
    %2002 = vmatpush.bf16.msra.mxu0 %v1775
    %2003 = vmatpush.bf16.msra.mxu0 %v1773
    %2004 = vmatpush.bf16.msra.mxu0 %v1771
    %2005 = vmatpush.bf16.msra.mxu0 %v1769
    %2006 = vmatpush.bf16.msra.mxu0 %v1767
    %2007 = vmatpush.bf16.msra.mxu0 %v1765
    %2008 = vmatmul.bf16.gmra.mxu0 %v1260
    %v2009 = vpop.f32.mrf.mxu0
    %v2010 = vadd.f32 %v1997, %v2009
    %v2011 = vpop.f32.mrf.mxu0
    %2012 = vdwg.mxu0
    %2013 = vmatpush.bf16.msra.mxu0 %v1668
    %2014 = vmatpush.bf16.msra.mxu0 %v1666
    %2015 = vmatpush.bf16.msra.mxu0 %v1664
    %2016 = vmatpush.bf16.msra.mxu0 %v1662
    %2017 = vmatpush.bf16.msra.mxu0 %v1660
    %2018 = vmatpush.bf16.msra.mxu0 %v1658
    %2019 = vmatpush.bf16.msra.mxu0 %v1656
    %2020 = vmatpush.bf16.msra.mxu0 %v1654
    %2021 = vmatmul.bf16.gmra.mxu0 %v1253
    %v2022 = vpop.f32.mrf.mxu0
    %v2023 = vadd.f32 %v1238, %v2022
    %v2024 = vpop.f32.mrf.mxu0
    %2025 = vdwg.mxu0
    %2026 = vmatpush.bf16.msra.mxu0 %v1684
    %2027 = vmatpush.bf16.msra.mxu0 %v1682
    %2028 = vmatpush.bf16.msra.mxu0 %v1680
    %2029 = vmatpush.bf16.msra.mxu0 %v1678
    %2030 = vmatpush.bf16.msra.mxu0 %v1676
    %2031 = vmatpush.bf16.msra.mxu0 %v1674
    %2032 = vmatpush.bf16.msra.mxu0 %v1672
    %2033 = vmatpush.bf16.msra.mxu0 %v1670
    %2034 = vmatmul.bf16.gmra.mxu0 %v1254
    %v2035 = vpop.f32.mrf.mxu0
    %v2036 = vadd.f32 %v2023, %v2035
    %v2037 = vpop.f32.mrf.mxu0
    %2038 = vdwg.mxu0
    %2039 = vmatpush.bf16.msra.mxu0 %v1700
    %2040 = vmatpush.bf16.msra.mxu0 %v1698
    %2041 = vmatpush.bf16.msra.mxu0 %v1696
    %2042 = vmatpush.bf16.msra.mxu0 %v1694
    %2043 = vmatpush.bf16.msra.mxu0 %v1692
    %2044 = vmatpush.bf16.msra.mxu0 %v1690
    %2045 = vmatpush.bf16.msra.mxu0 %v1688
    %2046 = vmatpush.bf16.msra.mxu0 %v1686
    %2047 = vmatmul.bf16.gmra.mxu0 %v1255
    %v2048 = vpop.f32.mrf.mxu0
    %v2049 = vadd.f32 %v2036, %v2048
    %v2050 = vpop.f32.mrf.mxu0
    %2051 = vdwg.mxu0
    %2052 = vmatpush.bf16.msra.mxu0 %v1716
    %2053 = vmatpush.bf16.msra.mxu0 %v1714
    %2054 = vmatpush.bf16.msra.mxu0 %v1712
    %2055 = vmatpush.bf16.msra.mxu0 %v1710
    %2056 = vmatpush.bf16.msra.mxu0 %v1708
    %2057 = vmatpush.bf16.msra.mxu0 %v1706
    %2058 = vmatpush.bf16.msra.mxu0 %v1704
    %2059 = vmatpush.bf16.msra.mxu0 %v1702
    %2060 = vmatmul.bf16.gmra.mxu0 %v1256
    %v2061 = vpop.f32.mrf.mxu0
    %v2062 = vadd.f32 %v2049, %v2061
    %v2063 = vpop.f32.mrf.mxu0
    %2064 = vdwg.mxu0
    %2065 = vmatpush.bf16.msra.mxu0 %v1732
    %2066 = vmatpush.bf16.msra.mxu0 %v1730
    %2067 = vmatpush.bf16.msra.mxu0 %v1728
    %2068 = vmatpush.bf16.msra.mxu0 %v1726
    %2069 = vmatpush.bf16.msra.mxu0 %v1724
    %2070 = vmatpush.bf16.msra.mxu0 %v1722
    %2071 = vmatpush.bf16.msra.mxu0 %v1720
    %2072 = vmatpush.bf16.msra.mxu0 %v1718
    %2073 = vmatmul.bf16.gmra.mxu0 %v1257
    %v2074 = vpop.f32.mrf.mxu0
    %v2075 = vadd.f32 %v2062, %v2074
    %v2076 = vpop.f32.mrf.mxu0
    %2077 = vdwg.mxu0
    %2078 = vmatpush.bf16.msra.mxu0 %v1748
    %2079 = vmatpush.bf16.msra.mxu0 %v1746
    %2080 = vmatpush.bf16.msra.mxu0 %v1744
    %2081 = vmatpush.bf16.msra.mxu0 %v1742
    %2082 = vmatpush.bf16.msra.mxu0 %v1740
    %2083 = vmatpush.bf16.msra.mxu0 %v1738
    %2084 = vmatpush.bf16.msra.mxu0 %v1736
    %2085 = vmatpush.bf16.msra.mxu0 %v1734
    %2086 = vmatmul.bf16.gmra.mxu0 %v1258
    %v2087 = vpop.f32.mrf.mxu0
    %v2088 = vadd.f32 %v2075, %v2087
    %v2089 = vpop.f32.mrf.mxu0
    %2090 = vdwg.mxu0
    %2091 = vmatpush.bf16.msra.mxu0 %v1764
    %2092 = vmatpush.bf16.msra.mxu0 %v1762
    %2093 = vmatpush.bf16.msra.mxu0 %v1760
    %2094 = vmatpush.bf16.msra.mxu0 %v1758
    %2095 = vmatpush.bf16.msra.mxu0 %v1756
    %2096 = vmatpush.bf16.msra.mxu0 %v1754
    %2097 = vmatpush.bf16.msra.mxu0 %v1752
    %2098 = vmatpush.bf16.msra.mxu0 %v1750
    %2099 = vmatmul.bf16.gmra.mxu0 %v1259
    %v2100 = vpop.f32.mrf.mxu0
    %v2101 = vadd.f32 %v2088, %v2100
    %v2102 = vpop.f32.mrf.mxu0
    %2103 = vdwg.mxu0
    %2104 = vmatpush.bf16.msra.mxu0 %v1780
    %2105 = vmatpush.bf16.msra.mxu0 %v1778
    %2106 = vmatpush.bf16.msra.mxu0 %v1776
    %2107 = vmatpush.bf16.msra.mxu0 %v1774
    %2108 = vmatpush.bf16.msra.mxu0 %v1772
    %2109 = vmatpush.bf16.msra.mxu0 %v1770
    %2110 = vmatpush.bf16.msra.mxu0 %v1768
    %2111 = vmatpush.bf16.msra.mxu0 %v1766
    %2112 = vmatmul.bf16.gmra.mxu0 %v1260
    %v2113 = vpop.f32.mrf.mxu0
    %v2114 = vadd.f32 %v2101, %v2113
    %v2115 = vpop.f32.mrf.mxu0
    %2116 = vdwg.mxu0
    %v2117 = vld [vmem:[%s4] sm:$0x3]
    %v2119 = vperm.slane %v2117, 0
    %v2120 = vperm.slane %v2117, 1
    %v2123 = vadd.f32 %v2010, %v2119
    %v2124 = vadd.f32 %v2114, %v2120
    %v2125 = vmax.f32 %v2123, 0.0
    %v2126 = vmax.f32 %v2124, 0.0
    %v2127 = vpack.c.bf16 %v2125, %v2125
    %v2128 = vpack.c.bf16 %v2126, %v2126
    %v2129 = vld [vmem:[#allocation10] sm:$0xf]
    %v2130 = vld [vmem:[#allocation10 + $0x4] sm:$0xf]
    %v2131 = vld [vmem:[#allocation10 + $0x8] sm:$0xf]
    %v2132 = vld [vmem:[#allocation10 + $0xc] sm:$0xf]
    %v2133 = vld [vmem:[#allocation10 + $0x10] sm:$0xf]
    %v2134 = vld [vmem:[#allocation10 + $0x14] sm:$0xf]
    %v2135 = vld [vmem:[#allocation10 + $0x18] sm:$0xf]
    %v2136 = vld [vmem:[#allocation10 + $0x1c] sm:$0xf]
    %v2137 = vld [vmem:[#allocation10 + $0x20] sm:$0xf]
    %v2138 = vld [vmem:[#allocation10 + $0x24] sm:$0xf]
    %v2139 = vld [vmem:[#allocation10 + $0x28] sm:$0xf]
    %v2140 = vld [vmem:[#allocation10 + $0x2c] sm:$0xf]
    %v2141 = vld [vmem:[#allocation10 + $0x30] sm:$0xf]
    %v2142 = vld [vmem:[#allocation10 + $0x34] sm:$0xf]
    %v2143 = vld [vmem:[#allocation10 + $0x38] sm:$0xf]
    %v2144 = vld [vmem:[#allocation10 + $0x3c] sm:$0xf]
    %v2145 = vld [vmem:[#allocation10 + $0x40] sm:$0xf]
    %v2146 = vld [vmem:[#allocation10 + $0x44] sm:$0xf]
    %v2147 = vld [vmem:[#allocation10 + $0x48] sm:$0xf]
    %v2148 = vld [vmem:[#allocation10 + $0x4c] sm:$0xf]
    %v2149 = vld [vmem:[#allocation10 + $0x50] sm:$0xf]
    %v2150 = vld [vmem:[#allocation10 + $0x54] sm:$0xf]
    %v2151 = vld [vmem:[#allocation10 + $0x58] sm:$0xf]
    %v2152 = vld [vmem:[#allocation10 + $0x5c] sm:$0xf]
    %v2153 = vld [vmem:[#allocation10 + $0x60] sm:$0xf]
    %v2154 = vld [vmem:[#allocation10 + $0x64] sm:$0xf]
    %v2155 = vld [vmem:[#allocation10 + $0x68] sm:$0xf]
    %v2156 = vld [vmem:[#allocation10 + $0x6c] sm:$0xf]
    %v2157 = vld [vmem:[#allocation10 + $0x70] sm:$0xf]
    %v2158 = vld [vmem:[#allocation10 + $0x74] sm:$0xf]
    %v2159 = vld [vmem:[#allocation10 + $0x78] sm:$0xf]
    %v2160 = vld [vmem:[#allocation10 + $0x7c] sm:$0xf]
    %v2161 = vld [vmem:[%s6] sm:$0x1]
    %v2163 = vperm.slane %v2161, 0
    %v2197 = vunpack.c.l.b16 %v2129
    %v2198 = vunpack.c.l.b16 %v2130
    %v2199 = vunpack.c.l.b16 %v2131
    %v2200 = vunpack.c.l.b16 %v2132
    %v2201 = vunpack.c.l.b16 %v2133
    %v2202 = vunpack.c.l.b16 %v2134
    %v2203 = vunpack.c.l.b16 %v2135
    %v2204 = vunpack.c.l.b16 %v2136
    %v2205 = vunpack.c.l.b16 %v2137
    %v2206 = vunpack.c.l.b16 %v2138
    %v2207 = vunpack.c.l.b16 %v2139
    %v2208 = vunpack.c.l.b16 %v2140
    %v2209 = vunpack.c.l.b16 %v2141
    %v2210 = vunpack.c.l.b16 %v2142
    %v2211 = vunpack.c.l.b16 %v2143
    %v2212 = vunpack.c.l.b16 %v2144
    %v2213 = vunpack.c.l.b16 %v2145
    %v2214 = vunpack.c.l.b16 %v2146
    %v2215 = vunpack.c.l.b16 %v2147
    %v2216 = vunpack.c.l.b16 %v2148
    %v2217 = vunpack.c.l.b16 %v2149
    %v2218 = vunpack.c.l.b16 %v2150
    %v2219 = vunpack.c.l.b16 %v2151
    %v2220 = vunpack.c.l.b16 %v2152
    %v2221 = vunpack.c.l.b16 %v2153
    %v2222 = vunpack.c.l.b16 %v2154
    %v2223 = vunpack.c.l.b16 %v2155
    %v2224 = vunpack.c.l.b16 %v2156
    %v2225 = vunpack.c.l.b16 %v2157
    %v2226 = vunpack.c.l.b16 %v2158
    %v2227 = vunpack.c.l.b16 %v2159
    %v2228 = vunpack.c.l.b16 %v2160
    %v2229 = vpack.c.b16 %v2198, %v2197
    %v2230 = vpack.c.b16 %v2200, %v2199
    %v2231 = vpack.c.b16 %v2202, %v2201
    %v2232 = vpack.c.b16 %v2204, %v2203
    %v2233 = vpack.c.b16 %v2206, %v2205
    %v2234 = vpack.c.b16 %v2208, %v2207
    %v2235 = vpack.c.b16 %v2210, %v2209
    %v2236 = vpack.c.b16 %v2212, %v2211
    %v2237 = vpack.c.b16 %v2214, %v2213
    %v2238 = vpack.c.b16 %v2216, %v2215
    %v2239 = vpack.c.b16 %v2218, %v2217
    %v2240 = vpack.c.b16 %v2220, %v2219
    %v2241 = vpack.c.b16 %v2222, %v2221
    %v2242 = vpack.c.b16 %v2224, %v2223
    %v2243 = vpack.c.b16 %v2226, %v2225
    %v2244 = vpack.c.b16 %v2228, %v2227
    %2261 = vmatpush.bf16.msra.mxu0 %v2236
    %2262 = vmatpush.bf16.msra.mxu0 %v2235
    %2263 = vmatpush.bf16.msra.mxu0 %v2234
    %2264 = vmatpush.bf16.msra.mxu0 %v2233
    %2265 = vmatpush.bf16.msra.mxu0 %v2232
    %2266 = vmatpush.bf16.msra.mxu0 %v2231
    %2267 = vmatpush.bf16.msra.mxu0 %v2230
    %2268 = vmatpush.bf16.msra.mxu0 %v2229
    %2269 = vmatmul.bf16.gmra.mxu0 %v2127
    %v2270 = vpop.f32.mrf.mxu0
    %v2271 = vadd.f32 %v2163, %v2270
    %v2272 = vpop.f32.mrf.mxu0
    %2273 = vdwg.mxu0
    %2274 = vmatpush.bf16.msra.mxu0 %v2244
    %2275 = vmatpush.bf16.msra.mxu0 %v2243
    %2276 = vmatpush.bf16.msra.mxu0 %v2242
    %2277 = vmatpush.bf16.msra.mxu0 %v2241
    %2278 = vmatpush.bf16.msra.mxu0 %v2240
    %2279 = vmatpush.bf16.msra.mxu0 %v2239
    %2280 = vmatpush.bf16.msra.mxu0 %v2238
    %2281 = vmatpush.bf16.msra.mxu0 %v2237
    %2282 = vmatmul.bf16.gmra.mxu0 %v2128
    %v2283 = vpop.f32.mrf.mxu0
    %v2284 = vadd.f32 %v2271, %v2283
    %v2285 = vpop.f32.mrf.mxu0
    %2286 = vdwg.mxu0
    %2287 = vst [vmem:[#allocation11] sm:$0xff] %v2284
    // Predicated region
    $region50: #{tpu_custom_call.1} parent=1 // pred_check
      _
    $region51: #{tpu_custom_call.1} parent=1 // pred_check_branch
      %2289 = sbr.rel (0) target = $region53
    $region52: #{tpu_custom_call.1} parent=1 // pred_region
      %2291 = vsyncadd [#allocation4], 0
      %s2293 = sshll.u32 [#allocation11], 4
      %s2294 = int_to_ptr.vmem [resolvable:$true] %s2293
      %s2295 = sshll.u32 %s7, 4
      %s2296 = int_to_ptr.hbm [resolvable:$true] %s2295
      %2298 = dma.vmem_to_hbm [thread:$0]  %s2294, 128, %s2296, [#allocation4]
    $region53: #{tpu_custom_call.1} parent=1 // pred_fallthru
      _
    // Predicated region
    $region54: #{tpu_custom_call.1} parent=1 // pred_check
      _
    $region55: #{tpu_custom_call.1} parent=1 // pred_check_branch
      %2300 = sbr.rel (0) target = $region57
    $region56: #{tpu_custom_call.1} parent=1 // pred_region
      %2302 = dma.done [#allocation4], 128
    $region57: #{tpu_custom_call.1} parent=1 // pred_fallthru
      _
    %2303 = vsyncpa [#allocation3], 1
    %2304 = vsyncpa [#allocation6], 1
    %2305 = vsyncpa [#allocation9], 1
    %2306 = vsyncpa [#allocation4], 1

</llo_original>
